<compile_context>
chip_gen: v7x
topology: tpu7x:2x2x1
jax: 0.10.0
libtpu: 0.0.40
codegen_flags: <defaults>
</compile_context>

<pallas_src>
import math

import jax
import jax.numpy as jnp
from jax import lax
from jax.experimental import pallas as pl
from jax.experimental.pallas import tpu as pltpu


# ------------------------------ helpers -------------------------------------

def _mm(a, b, ca, cb):
    """dot_general contracting dim `ca` of a with dim `cb` of b, f32 accum."""
    return lax.dot_general(a, b, (((ca,), (cb,)), ((), ())),
                           preferred_element_type=jnp.float32)


def _pick_tile(n, cap):
    """HW-axis tile: the full axis if it fits under `cap` (always a legal full-dim
    block), otherwise the largest divisor of n <= cap that is a multiple of 256
    (lane-width & bf16-sublane friendly), falling back to 128 then 16. Never
    silently returns an over-cap tile."""
    if n <= cap:
        return n
    for step in (256, 128, 16):
        t = (cap // step) * step
        while t >= step:
            if n % t == 0:
                return t
            t -= step
    raise ValueError(f"no suitable HW tile for n={n} under cap={cap}")


def _nchw_to_flat_bf16(x):
    # (B, C, H, W) -> (B, H*W, C), bf16.  The cast is fused into the transpose
    # by XLA so only a half-size (bf16) copy is materialized.
    # TODO(synk): ideally the producer hands us channels-last activations and
    # this copy disappears entirely.
    B, C, H, W = x.shape
    return jnp.transpose(x, (0, 2, 3, 1)).reshape(B, H * W, C).astype(jnp.bfloat16)


# ----------------------------- Pallas kernels -------------------------------

def _tok2img_kernel(tokens_ref, img_ref, pe_ref, dense_ref,
                    wq_ref, wk_ref, wv_ref, wo_ref, wk2_ref, wv2_ref,
                    hs_ref, k2_ref, v2_ref,
                    q_sc, m_sc, l_sc, acc_sc):
    """Token -> image cross-attention, flash-style over kv (=HW) tiles.
    Grid = (n_kv, B): kv outer (reduction, 'arbitrary'), batch inner
    ('parallel'), so the batch-broadcast img/pe blocks stay VMEM-resident
    across the inner batch loop.  src/pos adds are fused here:
      k = (img + dense + pe) @ wk,  v = (img + dense) @ wv.
    In the finish block hs is written and hs@wk2 / hs@wv2 are precomputed for
    kernel 2."""
    kv = pl.program_id(0)
    b = pl.program_id(1)

    @pl.when(kv == 0)
    def _init():
        # hoist q projection (scale already folded into wq) out of the kv loop
        tok_bf = tokens_ref[0].astype(jnp.bfloat16)                   # (Nt, D)
        q_sc[b] = _mm(tok_bf, wq_ref[...], 1, 0).astype(jnp.bfloat16)
        m_sc[b] = jnp.full(m_sc.shape[1:], -jnp.inf, dtype=m_sc.dtype)
        l_sc[b] = jnp.zeros(l_sc.shape[1:], dtype=l_sc.dtype)
        acc_sc[b] = jnp.zeros(acc_sc.shape[1:], dtype=acc_sc.dtype)

    # fused broadcast adds (bf16; src / pos_src never hit HBM)
    src_tile = img_ref[0] + dense_ref[0]                              # (tk, D)
    k_in = src_tile + pe_ref[0]                                       # (tk, D)

    k = _mm(k_in, wk_ref[...], 1, 0).astype(jnp.bfloat16)             # (tk, D)
    v = _mm(src_tile, wv_ref[...], 1, 0).astype(jnp.bfloat16)         # (tk, D)

    q = q_sc[b]                                                       # (Nt, D) bf16
    # scores: contract last dims (no explicit transpose of the (tk, D) tile)
    s = _mm(q, k, 1, 1)                                               # (Nt, tk) f32

    m_prev = m_sc[b]                                                  # (Nt, 1)
    m_new = jnp.maximum(m_prev, jnp.max(s, axis=-1, keepdims=True))
    alpha = jnp.exp(m_prev - m_new)
    p = jnp.exp(s - m_new)                                            # (Nt, tk)
    l_sc[b] = alpha * l_sc[b] + jnp.sum(p, axis=-1, keepdims=True)
    acc_sc[b] = alpha * acc_sc[b] + _mm(p.astype(jnp.bfloat16), v, 1, 0)
    m_sc[b] = m_new

    @pl.when(kv == pl.num_programs(0) - 1)
    def _finish():
        attn = acc_sc[b] * pl.reciprocal(l_sc[b], approx=True)        # (Nt, D)
        hs = tokens_ref[0] + _mm(attn.astype(jnp.bfloat16), wo_ref[...], 1, 0)
        hs_ref[0] = hs.astype(hs_ref.dtype)
        # precompute kernel-2 K/V once (so kernel 2 never touches wk2/wv2)
        hs_bf = hs.astype(jnp.bfloat16)
        k2_ref[0] = _mm(hs_bf, wk2_ref[...], 1, 0).astype(k2_ref.dtype)
        v2_ref[0] = _mm(hs_bf, wv2_ref[...], 1, 0).astype(v2_ref.dtype)


def _img2tok_kernel(img_ref, pe_ref, dense_ref, k2_ref, v2_ref,
                    wq_ref, wo_ref, out_ref):
    """Image -> token cross-attention, tiled over the query (=HW) axis.
    Queries = (img + dense + pe); residual = (img + dense); K/V are the
    precomputed (Nt, D) bf16 projections of hs.  Scores are computed
    transposed (Nt, tq) so exp/max/sum are lane-dense."""
    src_tile = img_ref[0] + dense_ref[0]                              # (tq, D) bf16
    q_in = src_tile + pe_ref[0]                                       # (tq, D) bf16

    q = _mm(q_in, wq_ref[...], 1, 0).astype(jnp.bfloat16)             # (tq, D)
    k = k2_ref[0]                                                     # (Nt, D) bf16
    v = v2_ref[0]                                                     # (Nt, D) bf16

    s_t = _mm(k, q, 1, 1)                                             # (Nt, tq) f32
    m = jnp.max(s_t, axis=0, keepdims=True)                           # (1, tq)
    p = jnp.exp(s_t - m)                                              # (Nt, tq)
    p = p * pl.reciprocal(jnp.sum(p, axis=0, keepdims=True), approx=True)
    attn = _mm(p.astype(jnp.bfloat16), v, 0, 0)                       # (tq, D)

    out = src_tile.astype(jnp.float32) + _mm(attn.astype(jnp.bfloat16),
                                             wo_ref[...], 1, 0)
    out_ref[0] = out.astype(out_ref.dtype)


# ----------------------------- kernel wrappers -------------------------------

def token_to_image_attention(tokens, img_flat, pe_flat, dense_flat,
                             wq, wk, wv, wo, wk2, wv2, *, kv_tile_cap=2048):
    """tokens: (B, Nt, D) f32; img/pe: (1, HW, D) bf16; dense: (B, HW, D) bf16;
    w*: (D, D) bf16 (scale already folded into wq).  Returns (hs, k2, v2)."""
    B, Nt, D = tokens.shape
    HW = img_flat.shape[1]
    tk = _pick_tile(HW, kv_tile_cap)
    n_kv = HW // tk

    return pl.pallas_call(
        _tok2img_kernel,
        out_shape=(
            jax.ShapeDtypeStruct((B, Nt, D), tokens.dtype),    # hs
            jax.ShapeDtypeStruct((B, Nt, D), jnp.bfloat16),    # k2 = hs @ wk2
            jax.ShapeDtypeStruct((B, Nt, D), jnp.bfloat16),    # v2 = hs @ wv2
        ),
        grid=(n_kv, B),   # kv outer so broadcast img/pe stay resident across b
        in_specs=[
            pl.BlockSpec((1, Nt, D), lambda k, b: (b, 0, 0)),  # tokens
            pl.BlockSpec((1, tk, D), lambda k, b: (0, k, 0)),  # image emb (bcast)
            pl.BlockSpec((1, tk, D), lambda k, b: (0, k, 0)),  # image pe  (bcast)
            pl.BlockSpec((1, tk, D), lambda k, b: (b, k, 0)),  # dense prompt
            pl.BlockSpec((D, D), lambda k, b: (0, 0)),         # wq (scaled)
            pl.BlockSpec((D, D), lambda k, b: (0, 0)),         # wk
            pl.BlockSpec((D, D), lambda k, b: (0, 0)),         # wv
            pl.BlockSpec((D, D), lambda k, b: (0, 0)),         # wo
            pl.BlockSpec((D, D), lambda k, b: (0, 0)),         # wk2 (finish only)
            pl.BlockSpec((D, D), lambda k, b: (0, 0)),         # wv2 (finish only)
        ],
        out_specs=[
            pl.BlockSpec((1, Nt, D), lambda k, b: (b, 0, 0)),  # hs
            pl.BlockSpec((1, Nt, D), lambda k, b: (b, 0, 0)),  # k2
            pl.BlockSpec((1, Nt, D), lambda k, b: (b, 0, 0)),  # v2
        ],
        scratch_shapes=[
            pltpu.VMEM((B, Nt, D), jnp.bfloat16),   # hoisted q per batch
            pltpu.VMEM((B, Nt, 1), jnp.float32),    # running max
            pltpu.VMEM((B, Nt, 1), jnp.float32),    # running denom
            pltpu.VMEM((B, Nt, D), jnp.float32),    # running numerator
        ],
        compiler_params=pltpu.CompilerParams(
            dimension_semantics=("arbitrary", "parallel")),
    )(tokens, img_flat, pe_flat, dense_flat, wq, wk, wv, wo, wk2, wv2)


def image_to_token_attention(img_flat, pe_flat, dense_flat, k2, v2,
                             wq, wo, *, q_tile_cap=2048):
    """img/pe: (1, HW, D) bf16; dense: (B, HW, D) bf16; k2/v2: (B, Nt, D) bf16;
    wq (scale folded) / wo: (D, D) bf16.  Returns bf16 (B, HW, D) src."""
    B, Nt, D = k2.shape
    HW = img_flat.shape[1]
    tq = _pick_tile(HW, q_tile_cap)
    n_q = HW // tq

    return pl.pallas_call(
        _img2tok_kernel,
        out_shape=jax.ShapeDtypeStruct((B, HW, D), jnp.bfloat16),
        grid=(n_q, B),    # q outer so broadcast img/pe stay resident across b
        in_specs=[
            pl.BlockSpec((1, tq, D), lambda q, b: (0, q, 0)),  # image emb (bcast)
            pl.BlockSpec((1, tq, D), lambda q, b: (0, q, 0)),  # image pe  (bcast)
            pl.BlockSpec((1, tq, D), lambda q, b: (b, q, 0)),  # dense prompt
            pl.BlockSpec((1, Nt, D), lambda q, b: (b, 0, 0)),  # k2
            pl.BlockSpec((1, Nt, D), lambda q, b: (b, 0, 0)),  # v2
            pl.BlockSpec((D, D), lambda q, b: (0, 0)),         # wq2 (scaled)
            pl.BlockSpec((D, D), lambda q, b: (0, 0)),         # wo2
        ],
        out_specs=pl.BlockSpec((1, tq, D), lambda q, b: (b, q, 0)),
        compiler_params=pltpu.CompilerParams(
            dimension_semantics=("parallel", "parallel")),
    )(img_flat, pe_flat, dense_flat, k2, v2, wq, wo)


# ------------------------- parameter initialization -------------------------

def init_params(key, transformer_dim, num_multimask_outputs=3):
    D = transformer_dim
    num_mask_tokens = num_multimask_outputs + 1
    ks = jax.random.split(key, 10)
    std = 0.02
    params = {
        # nn.Embedding(1, D) / nn.Embedding(num_mask_tokens, D), trunc_normal std=0.02
        "iou_token": std * jax.random.truncated_normal(ks[0], -2.0, 2.0, (1, D), jnp.float32),
        "mask_tokens": std * jax.random.truncated_normal(ks[1], -2.0, 2.0, (num_mask_tokens, D), jnp.float32),
        # stand-in two-way transformer weights (token->image then image->token)
        "wq1": jax.random.normal(ks[2], (D, D), jnp.float32) / math.sqrt(D),
        "wk1": jax.random.normal(ks[3], (D, D), jnp.float32) / math.sqrt(D),
        "wv1": jax.random.normal(ks[4], (D, D), jnp.float32) / math.sqrt(D),
        "wo1": jax.random.normal(ks[5], (D, D), jnp.float32) / math.sqrt(D),
        "wq2": jax.random.normal(ks[6], (D, D), jnp.float32) / math.sqrt(D),
        "wk2": jax.random.normal(ks[7], (D, D), jnp.float32) / math.sqrt(D),
        "wv2": jax.random.normal(ks[8], (D, D), jnp.float32) / math.sqrt(D),
        "wo2": jax.random.normal(ks[9], (D, D), jnp.float32) / math.sqrt(D),
    }
    return params, num_mask_tokens


# ------------------------------ forward pass --------------------------------

def mask_decoder_neck_forward(params, num_mask_tokens,
                              image_embeddings, image_pe,
                              sparse_prompt_embeddings, dense_prompt_embeddings,
                              multimask_output):
    del multimask_output  # not used by the neck's forward (matches PyTorch)
    B = sparse_prompt_embeddings.shape[0]
    _, C, H, W = image_embeddings.shape
    D = C

    # tokens = cat([iou_token, mask_tokens]) expanded to batch, then cat sparse
    output_tokens = jnp.concatenate([params["iou_token"], params["mask_tokens"]], axis=0)  # (1+M, D)
    output_tokens = jnp.broadcast_to(output_tokens[None], (B, output_tokens.shape[0], D))
    tokens = jnp.concatenate(
        [output_tokens, sparse_prompt_embeddings.astype(jnp.float32)], axis=1)             # (B, Nt, D)

    # channels-last flattened bf16 views; src / pos_src are never materialized:
    # src = repeat_interleave(image_embeddings, B) + dense, and +pe, are fused
    # into the attention kernels below (the batch "repeat" is just the
    # broadcast index_map on the image/pe blocks).
    img_flat = _nchw_to_flat_bf16(image_embeddings)          # (1, HW, C)
    pe_flat = _nchw_to_flat_bf16(image_pe)                   # (1, HW, C)
    dense_flat = _nchw_to_flat_bf16(dense_prompt_embeddings)  # (B, HW, C)

    src_shape = (B, C, H, W)  # shape of the NCHW `src` tensor in the PyTorch code

    # bf16 weights for the MXU path (f32 accumulation inside the kernels);
    # 1/sqrt(D) attention scale folded into wq1/wq2 at staging time.
    scale = 1.0 / math.sqrt(D)
    wq1 = (params["wq1"] * scale).astype(jnp.bfloat16)
    wk1 = params["wk1"].astype(jnp.bfloat16)
    wv1 = params["wv1"].astype(jnp.bfloat16)
    wo1 = params["wo1"].astype(jnp.bfloat16)
    wq2 = (params["wq2"] * scale).astype(jnp.bfloat16)
    wk2 = params["wk2"].astype(jnp.bfloat16)
    wv2 = params["wv2"].astype(jnp.bfloat16)
    wo2 = params["wo2"].astype(jnp.bfloat16)

    # --- stand-in two-way transformer: hs, src = transformer(src, pos_src, tokens) ---
    hs, k2, v2 = token_to_image_attention(tokens, img_flat, pe_flat, dense_flat,
                                          wq1, wk1, wv1, wo1, wk2, wv2)
    src_out = image_to_token_attention(img_flat, pe_flat, dense_flat, k2, v2,
                                       wq2, wo2)

    iou_token_out = hs[:, 0, :]                        # (B, D)
    mask_tokens_out = hs[:, 1:1 + num_mask_tokens, :]  # (B, num_mask_tokens, D)

    return src_out, iou_token_out, mask_tokens_out, src_shape


# ---------------------------------- main -------------------------------------

if __name__ == "__main__":
    key = jax.random.PRNGKey(0)
    k_param, k_img, k_pe, k_sparse, k_dense = jax.random.split(key, 5)

    transformer_dim = 32
    num_multimask_outputs = 3
    B, H, W = 2, 8, 8
    num_sparse = 3

    params, num_mask_tokens = init_params(k_param, transformer_dim, num_multimask_outputs)

    image_embeddings = jax.random.normal(k_img, (1, transformer_dim, H, W), jnp.float32)
    image_pe = jax.random.normal(k_pe, (1, transformer_dim, H, W), jnp.float32)
    sparse_prompt_embeddings = jax.random.normal(k_sparse, (B, num_sparse, transformer_dim), jnp.float32)
    dense_prompt_embeddings = jax.random.normal(k_dense, (B, transformer_dim, H, W), jnp.float32)

    src, iou_token_out, mask_tokens_out, src_shape = mask_decoder_neck_forward(
        params, num_mask_tokens,
        image_embeddings, image_pe,
        sparse_prompt_embeddings, dense_prompt_embeddings,
        multimask_output=True,
    )
    jax.block_until_ready((src, iou_token_out, mask_tokens_out))

    assert src.shape == (B, H * W, transformer_dim)
    assert iou_token_out.shape == (B, transformer_dim)
    assert mask_tokens_out.shape == (B, num_mask_tokens, transformer_dim)
    assert src_shape == (B, transformer_dim, H, W)
    assert bool(jnp.all(jnp.isfinite(src.astype(jnp.float32))))
    assert bool(jnp.all(jnp.isfinite(iou_token_out)))
    assert bool(jnp.all(jnp.isfinite(mask_tokens_out)))
    print("KERNEL_OK")
</pallas_src>

<mosaic_0001>
module attributes {stable_mosaic.version = 11 : i64} {
  func.func @_tok2img_kernel(%arg0: i32, %arg1: i32, %arg2: memref<1x8x32xf32, #tpu.memory_space<vmem>>, %arg3: memref<1x64x32xbf16, #tpu.memory_space<vmem>>, %arg4: memref<1x64x32xbf16, #tpu.memory_space<vmem>>, %arg5: memref<1x64x32xbf16, #tpu.memory_space<vmem>>, %arg6: memref<32x32xbf16, #tpu.memory_space<vmem>>, %arg7: memref<32x32xbf16, #tpu.memory_space<vmem>>, %arg8: memref<32x32xbf16, #tpu.memory_space<vmem>>, %arg9: memref<32x32xbf16, #tpu.memory_space<vmem>>, %arg10: memref<32x32xbf16, #tpu.memory_space<vmem>>, %arg11: memref<32x32xbf16, #tpu.memory_space<vmem>>, %arg12: memref<1x8x32xf32, #tpu.memory_space<vmem>>, %arg13: memref<1x8x32xbf16, #tpu.memory_space<vmem>>, %arg14: memref<1x8x32xbf16, #tpu.memory_space<vmem>>, %arg15: memref<2x8x32xbf16, #tpu.memory_space<vmem>>, %arg16: memref<2x8x1xf32, #tpu.memory_space<vmem>>, %arg17: memref<2x8x1xf32, #tpu.memory_space<vmem>>, %arg18: memref<2x8x32xf32, #tpu.memory_space<vmem>>) attributes {dimension_semantics = [#tpu.dimension_semantics<arbitrary>, #tpu.dimension_semantics<parallel>], iteration_bounds = array<i64: 1, 2>, scalar_prefetch = 0 : i64, scratch_operands = 4 : i64, tpu.core_type = #tpu.core_type<tc>, window_params = [{transform_indices = @transform_0, window_bounds = array<i64: 1, 8, 32>}, {transform_indices = @transform_1, window_bounds = array<i64: 1, 64, 32>}, {transform_indices = @transform_2, window_bounds = array<i64: 1, 64, 32>}, {transform_indices = @transform_3, window_bounds = array<i64: 1, 64, 32>}, {pipeline_mode = #tpu.pipeline_mode<synchronous>, transform_indices = @transform_4, window_bounds = array<i64: 32, 32>}, {pipeline_mode = #tpu.pipeline_mode<synchronous>, transform_indices = @transform_5, window_bounds = array<i64: 32, 32>}, {pipeline_mode = #tpu.pipeline_mode<synchronous>, transform_indices = @transform_6, window_bounds = array<i64: 32, 32>}, {pipeline_mode = #tpu.pipeline_mode<synchronous>, transform_indices = @transform_7, window_bounds = array<i64: 32, 32>}, {pipeline_mode = #tpu.pipeline_mode<synchronous>, transform_indices = @transform_8, window_bounds = array<i64: 32, 32>}, {pipeline_mode = #tpu.pipeline_mode<synchronous>, transform_indices = @transform_9, window_bounds = array<i64: 32, 32>}, {transform_indices = @transform_10, window_bounds = array<i64: 1, 8, 32>}, {transform_indices = @transform_11, window_bounds = array<i64: 1, 8, 32>}, {transform_indices = @transform_12, window_bounds = array<i64: 1, 8, 32>}]} {
    %c0_i32 = arith.constant 0 : i32
    %0 = arith.cmpi eq, %arg0, %c0_i32 : i32
    %1 = arith.extui %0 : i1 to i32
    %c0_i32_0 = arith.constant 0 : i32
    %2 = arith.cmpi ne, %1, %c0_i32_0 : i32
    scf.if %2 {
      %c0_34 = arith.constant 0 : index
      %c0_35 = arith.constant 0 : index
      %c0_36 = arith.constant 0 : index
      %62 = vector.load %arg2[%c0_34, %c0_35, %c0_36] : memref<1x8x32xf32, #tpu.memory_space<vmem>>, vector<1x8x32xf32>
      %63 = vector.shape_cast %62 : vector<1x8x32xf32> to vector<8x32xf32>
      %64 = arith.truncf %63 : vector<8x32xf32> to vector<8x32xbf16>
      %c0_37 = arith.constant 0 : index
      %c0_38 = arith.constant 0 : index
      %65 = vector.load %arg6[%c0_37, %c0_38] : memref<32x32xbf16, #tpu.memory_space<vmem>>, vector<32x32xbf16>
      %cst_39 = arith.constant dense<0.000000e+00> : vector<8x32xf32>
      %66 = tpu.matmul %64, %65, %cst_39 {dimension_numbers = #tpu.dot_dimension_numbers<[1], [0], [0], [1], [0, 0, 1, 1], [], []>} : vector<8x32xbf16>, vector<32x32xbf16>, vector<8x32xf32> -> vector<8x32xf32>
      %67 = arith.truncf %66 : vector<8x32xf32> to vector<8x32xbf16>
      %68 = arith.index_cast %arg1 : i32 to index
      %c0_40 = arith.constant 0 : index
      %c0_41 = arith.constant 0 : index
      %69 = vector.load %arg15[%68, %c0_40, %c0_41] : memref<2x8x32xbf16, #tpu.memory_space<vmem>>, vector<1x8x32xbf16>
      %70 = vector.shape_cast %69 : vector<1x8x32xbf16> to vector<8x32xbf16>
      %71 = vector.shape_cast %67 : vector<8x32xbf16> to vector<1x8x32xbf16>
      tpu.vector_store %arg15[%68, %c0_40, %c0_41], %71 {strides = array<i32>} : memref<2x8x32xbf16, #tpu.memory_space<vmem>>, vector<1x8x32xbf16>,
      %cst_42 = arith.constant 0xFF800000 : f32
      %72 = vector.broadcast %cst_42 : f32 to vector<8x1xf32>
      %73 = arith.index_cast %arg1 : i32 to index
      %c0_43 = arith.constant 0 : index
      %c0_44 = arith.constant 0 : index
      %74 = vector.load %arg16[%73, %c0_43, %c0_44] : memref<2x8x1xf32, #tpu.memory_space<vmem>>, vector<1x8x1xf32>
      %75 = vector.shape_cast %74 : vector<1x8x1xf32> to vector<8x1xf32>
      %76 = vector.shape_cast %72 : vector<8x1xf32> to vector<1x8x1xf32>
      tpu.vector_store %arg16[%73, %c0_43, %c0_44], %76 {strides = array<i32>} : memref<2x8x1xf32, #tpu.memory_space<vmem>>, vector<1x8x1xf32>,
      %cst_45 = arith.constant 0.000000e+00 : f32
      %77 = vector.broadcast %cst_45 : f32 to vector<8x1xf32>
      %78 = arith.index_cast %arg1 : i32 to index
      %c0_46 = arith.constant 0 : index
      %c0_47 = arith.constant 0 : index
      %79 = vector.load %arg17[%78, %c0_46, %c0_47] : memref<2x8x1xf32, #tpu.memory_space<vmem>>, vector<1x8x1xf32>
      %80 = vector.shape_cast %79 : vector<1x8x1xf32> to vector<8x1xf32>
      %81 = vector.shape_cast %77 : vector<8x1xf32> to vector<1x8x1xf32>
      tpu.vector_store %arg17[%78, %c0_46, %c0_47], %81 {strides = array<i32>} : memref<2x8x1xf32, #tpu.memory_space<vmem>>, vector<1x8x1xf32>,
      %cst_48 = arith.constant 0.000000e+00 : f32
      %82 = vector.broadcast %cst_48 : f32 to vector<8x32xf32>
      %83 = arith.index_cast %arg1 : i32 to index
      %c0_49 = arith.constant 0 : index
      %c0_50 = arith.constant 0 : index
      %84 = vector.load %arg18[%83, %c0_49, %c0_50] : memref<2x8x32xf32, #tpu.memory_space<vmem>>, vector<1x8x32xf32>
      %85 = vector.shape_cast %84 : vector<1x8x32xf32> to vector<8x32xf32>
      %86 = vector.shape_cast %82 : vector<8x32xf32> to vector<1x8x32xf32>
      tpu.vector_store %arg18[%83, %c0_49, %c0_50], %86 {strides = array<i32>} : memref<2x8x32xf32, #tpu.memory_space<vmem>>, vector<1x8x32xf32>,
    } else {
    }
    %c0 = arith.constant 0 : index
    %c0_1 = arith.constant 0 : index
    %c0_2 = arith.constant 0 : index
    %3 = vector.load %arg3[%c0, %c0_1, %c0_2] : memref<1x64x32xbf16, #tpu.memory_space<vmem>>, vector<1x64x32xbf16>
    %4 = vector.shape_cast %3 : vector<1x64x32xbf16> to vector<64x32xbf16>
    %c0_3 = arith.constant 0 : index
    %c0_4 = arith.constant 0 : index
    %c0_5 = arith.constant 0 : index
    %5 = vector.load %arg5[%c0_3, %c0_4, %c0_5] : memref<1x64x32xbf16, #tpu.memory_space<vmem>>, vector<1x64x32xbf16>
    %6 = vector.shape_cast %5 : vector<1x64x32xbf16> to vector<64x32xbf16>
    %7 = arith.addf %4, %6 : vector<64x32xbf16>
    %c0_6 = arith.constant 0 : index
    %c0_7 = arith.constant 0 : index
    %c0_8 = arith.constant 0 : index
    %8 = vector.load %arg4[%c0_6, %c0_7, %c0_8] : memref<1x64x32xbf16, #tpu.memory_space<vmem>>, vector<1x64x32xbf16>
    %9 = vector.shape_cast %8 : vector<1x64x32xbf16> to vector<64x32xbf16>
    %10 = arith.addf %7, %9 : vector<64x32xbf16>
    %c0_9 = arith.constant 0 : index
    %c0_10 = arith.constant 0 : index
    %11 = vector.load %arg7[%c0_9, %c0_10] : memref<32x32xbf16, #tpu.memory_space<vmem>>, vector<32x32xbf16>
    %cst = arith.constant dense<0.000000e+00> : vector<64x32xf32>
    %12 = tpu.matmul %10, %11, %cst {dimension_numbers = #tpu.dot_dimension_numbers<[1], [0], [0], [1], [0, 0, 1, 1], [], []>} : vector<64x32xbf16>, vector<32x32xbf16>, vector<64x32xf32> -> vector<64x32xf32>
    %13 = arith.truncf %12 : vector<64x32xf32> to vector<64x32xbf16>
    %c0_11 = arith.constant 0 : index
    %c0_12 = arith.constant 0 : index
    %14 = vector.load %arg8[%c0_11, %c0_12] : memref<32x32xbf16, #tpu.memory_space<vmem>>, vector<32x32xbf16>
    %cst_13 = arith.constant dense<0.000000e+00> : vector<64x32xf32>
    %15 = tpu.matmul %7, %14, %cst_13 {dimension_numbers = #tpu.dot_dimension_numbers<[1], [0], [0], [1], [0, 0, 1, 1], [], []>} : vector<64x32xbf16>, vector<32x32xbf16>, vector<64x32xf32> -> vector<64x32xf32>
    %16 = arith.truncf %15 : vector<64x32xf32> to vector<64x32xbf16>
    %17 = arith.index_cast %arg1 : i32 to index
    %c0_14 = arith.constant 0 : index
    %c0_15 = arith.constant 0 : index
    %18 = vector.load %arg15[%17, %c0_14, %c0_15] : memref<2x8x32xbf16, #tpu.memory_space<vmem>>, vector<1x8x32xbf16>
    %19 = vector.shape_cast %18 : vector<1x8x32xbf16> to vector<8x32xbf16>
    %cst_16 = arith.constant dense<0.000000e+00> : vector<8x64xf32>
    %20 = tpu.matmul %19, %13, %cst_16 {dimension_numbers = #tpu.dot_dimension_numbers<[1], [1], [0], [0], [0, 0, 1, 0], [], []>} : vector<8x32xbf16>, vector<64x32xbf16>, vector<8x64xf32> -> vector<8x64xf32>
    %21 = arith.index_cast %arg1 : i32 to index
    %c0_17 = arith.constant 0 : index
    %c0_18 = arith.constant 0 : index
    %22 = vector.load %arg16[%21, %c0_17, %c0_18] : memref<2x8x1xf32, #tpu.memory_space<vmem>>, vector<1x8x1xf32>
    %23 = vector.shape_cast %22 : vector<1x8x1xf32> to vector<8x1xf32>
    %cst_19 = arith.constant dense<0xFF800000> : vector<8xf32>
    %24 = vector.multi_reduction <maximumf>, %20, %cst_19 [1] : vector<8x64xf32> to vector<8xf32>
    %25 = vector.shape_cast %24 : vector<8xf32> to vector<8x1xf32>
    %26 = arith.maximumf %23, %25 : vector<8x1xf32>
    %27 = arith.subf %23, %26 : vector<8x1xf32>
    %28 = math.exp %27 : vector<8x1xf32>
    %29 = vector.broadcast %26 : vector<8x1xf32> to vector<8x64xf32>
    %30 = arith.subf %20, %29 : vector<8x64xf32>
    %31 = math.exp %30 : vector<8x64xf32>
    %32 = arith.index_cast %arg1 : i32 to index
    %c0_20 = arith.constant 0 : index
    %c0_21 = arith.constant 0 : index
    %33 = vector.load %arg17[%32, %c0_20, %c0_21] : memref<2x8x1xf32, #tpu.memory_space<vmem>>, vector<1x8x1xf32>
    %34 = vector.shape_cast %33 : vector<1x8x1xf32> to vector<8x1xf32>
    %35 = arith.mulf %28, %34 : vector<8x1xf32>
    %cst_22 = arith.constant dense<0.000000e+00> : vector<8xf32>
    %36 = vector.multi_reduction <add>, %31, %cst_22 [1] : vector<8x64xf32> to vector<8xf32>
    %37 = vector.shape_cast %36 : vector<8xf32> to vector<8x1xf32>
    %38 = arith.addf %35, %37 : vector<8x1xf32>
    %39 = arith.index_cast %arg1 : i32 to index
    %c0_23 = arith.constant 0 : index
    %c0_24 = arith.constant 0 : index
    %40 = vector.load %arg17[%39, %c0_23, %c0_24] : memref<2x8x1xf32, #tpu.memory_space<vmem>>, vector<1x8x1xf32>
    %41 = vector.shape_cast %40 : vector<1x8x1xf32> to vector<8x1xf32>
    %42 = vector.shape_cast %38 : vector<8x1xf32> to vector<1x8x1xf32>
    tpu.vector_store %arg17[%39, %c0_23, %c0_24], %42 {strides = array<i32>} : memref<2x8x1xf32, #tpu.memory_space<vmem>>, vector<1x8x1xf32>,
    %43 = arith.index_cast %arg1 : i32 to index
    %c0_25 = arith.constant 0 : index
    %c0_26 = arith.constant 0 : index
    %44 = vector.load %arg18[%43, %c0_25, %c0_26] : memref<2x8x32xf32, #tpu.memory_space<vmem>>, vector<1x8x32xf32>
    %45 = vector.shape_cast %44 : vector<1x8x32xf32> to vector<8x32xf32>
    %46 = vector.broadcast %28 : vector<8x1xf32> to vector<8x32xf32>
    %47 = arith.mulf %46, %45 : vector<8x32xf32>
    %48 = arith.truncf %31 : vector<8x64xf32> to vector<8x64xbf16>
    %cst_27 = arith.constant dense<0.000000e+00> : vector<8x32xf32>
    %49 = tpu.matmul %48, %16, %cst_27 {dimension_numbers = #tpu.dot_dimension_numbers<[1], [0], [0], [1], [0, 0, 1, 1], [], []>} : vector<8x64xbf16>, vector<64x32xbf16>, vector<8x32xf32> -> vector<8x32xf32>
    %50 = arith.addf %47, %49 : vector<8x32xf32>
    %51 = arith.index_cast %arg1 : i32 to index
    %c0_28 = arith.constant 0 : index
    %c0_29 = arith.constant 0 : index
    %52 = vector.load %arg18[%51, %c0_28, %c0_29] : memref<2x8x32xf32, #tpu.memory_space<vmem>>, vector<1x8x32xf32>
    %53 = vector.shape_cast %52 : vector<1x8x32xf32> to vector<8x32xf32>
    %54 = vector.shape_cast %50 : vector<8x32xf32> to vector<1x8x32xf32>
    tpu.vector_store %arg18[%51, %c0_28, %c0_29], %54 {strides = array<i32>} : memref<2x8x32xf32, #tpu.memory_space<vmem>>, vector<1x8x32xf32>,
    %55 = arith.index_cast %arg1 : i32 to index
    %c0_30 = arith.constant 0 : index
    %c0_31 = arith.constant 0 : index
    %56 = vector.load %arg16[%55, %c0_30, %c0_31] : memref<2x8x1xf32, #tpu.memory_space<vmem>>, vector<1x8x1xf32>
    %57 = vector.shape_cast %56 : vector<1x8x1xf32> to vector<8x1xf32>
    %58 = vector.shape_cast %26 : vector<8x1xf32> to vector<1x8x1xf32>
    tpu.vector_store %arg16[%55, %c0_30, %c0_31], %58 {strides = array<i32>} : memref<2x8x1xf32, #tpu.memory_space<vmem>>, vector<1x8x1xf32>,
    %c0_i32_32 = arith.constant 0 : i32
    %59 = arith.cmpi eq, %arg0, %c0_i32_32 : i32
    %60 = arith.extui %59 : i1 to i32
    %c0_i32_33 = arith.constant 0 : i32
    %61 = arith.cmpi ne, %60, %c0_i32_33 : i32
    scf.if %61 {
      %62 = arith.index_cast %arg1 : i32 to index
      %c0_34 = arith.constant 0 : index
      %c0_35 = arith.constant 0 : index
      %63 = vector.load %arg18[%62, %c0_34, %c0_35] : memref<2x8x32xf32, #tpu.memory_space<vmem>>, vector<1x8x32xf32>
      %64 = vector.shape_cast %63 : vector<1x8x32xf32> to vector<8x32xf32>
      %65 = arith.index_cast %arg1 : i32 to index
      %c0_36 = arith.constant 0 : index
      %c0_37 = arith.constant 0 : index
      %66 = vector.load %arg17[%65, %c0_36, %c0_37] : memref<2x8x1xf32, #tpu.memory_space<vmem>>, vector<1x8x1xf32>
      %67 = vector.shape_cast %66 : vector<1x8x1xf32> to vector<8x1xf32>
      %68 = tpu.reciprocal %67 {approx = true} : vector<8x1xf32> -> vector<8x1xf32>
      %69 = vector.broadcast %68 : vector<8x1xf32> to vector<8x32xf32>
      %70 = arith.mulf %64, %69 : vector<8x32xf32>
      %c0_38 = arith.constant 0 : index
      %c0_39 = arith.constant 0 : index
      %c0_40 = arith.constant 0 : index
      %71 = vector.load %arg2[%c0_38, %c0_39, %c0_40] : memref<1x8x32xf32, #tpu.memory_space<vmem>>, vector<1x8x32xf32>
      %72 = vector.shape_cast %71 : vector<1x8x32xf32> to vector<8x32xf32>
      %73 = arith.truncf %70 : vector<8x32xf32> to vector<8x32xbf16>
      %c0_41 = arith.constant 0 : index
      %c0_42 = arith.constant 0 : index
      %74 = vector.load %arg9[%c0_41, %c0_42] : memref<32x32xbf16, #tpu.memory_space<vmem>>, vector<32x32xbf16>
      %cst_43 = arith.constant dense<0.000000e+00> : vector<8x32xf32>
      %75 = tpu.matmul %73, %74, %cst_43 {dimension_numbers = #tpu.dot_dimension_numbers<[1], [0], [0], [1], [0, 0, 1, 1], [], []>} : vector<8x32xbf16>, vector<32x32xbf16>, vector<8x32xf32> -> vector<8x32xf32>
      %76 = arith.addf %72, %75 : vector<8x32xf32>
      %c0_44 = arith.constant 0 : index
      %c0_45 = arith.constant 0 : index
      %c0_46 = arith.constant 0 : index
      %77 = vector.load %arg12[%c0_44, %c0_45, %c0_46] : memref<1x8x32xf32, #tpu.memory_space<vmem>>, vector<1x8x32xf32>
      %78 = vector.shape_cast %77 : vector<1x8x32xf32> to vector<8x32xf32>
      %79 = vector.shape_cast %76 : vector<8x32xf32> to vector<1x8x32xf32>
      tpu.vector_store %arg12[%c0_44, %c0_45, %c0_46], %79 {strides = array<i32>} : memref<1x8x32xf32, #tpu.memory_space<vmem>>, vector<1x8x32xf32>,
      %80 = arith.truncf %76 : vector<8x32xf32> to vector<8x32xbf16>
      %c0_47 = arith.constant 0 : index
      %c0_48 = arith.constant 0 : index
      %81 = vector.load %arg10[%c0_47, %c0_48] : memref<32x32xbf16, #tpu.memory_space<vmem>>, vector<32x32xbf16>
      %cst_49 = arith.constant dense<0.000000e+00> : vector<8x32xf32>
      %82 = tpu.matmul %80, %81, %cst_49 {dimension_numbers = #tpu.dot_dimension_numbers<[1], [0], [0], [1], [0, 0, 1, 1], [], []>} : vector<8x32xbf16>, vector<32x32xbf16>, vector<8x32xf32> -> vector<8x32xf32>
      %83 = arith.truncf %82 : vector<8x32xf32> to vector<8x32xbf16>
      %c0_50 = arith.constant 0 : index
      %c0_51 = arith.constant 0 : index
      %c0_52 = arith.constant 0 : index
      %84 = vector.load %arg13[%c0_50, %c0_51, %c0_52] : memref<1x8x32xbf16, #tpu.memory_space<vmem>>, vector<1x8x32xbf16>
      %85 = vector.shape_cast %84 : vector<1x8x32xbf16> to vector<8x32xbf16>
      %86 = vector.shape_cast %83 : vector<8x32xbf16> to vector<1x8x32xbf16>
      tpu.vector_store %arg13[%c0_50, %c0_51, %c0_52], %86 {strides = array<i32>} : memref<1x8x32xbf16, #tpu.memory_space<vmem>>, vector<1x8x32xbf16>,
      %c0_53 = arith.constant 0 : index
      %c0_54 = arith.constant 0 : index
      %87 = vector.load %arg11[%c0_53, %c0_54] : memref<32x32xbf16, #tpu.memory_space<vmem>>, vector<32x32xbf16>
      %cst_55 = arith.constant dense<0.000000e+00> : vector<8x32xf32>
      %88 = tpu.matmul %80, %87, %cst_55 {dimension_numbers = #tpu.dot_dimension_numbers<[1], [0], [0], [1], [0, 0, 1, 1], [], []>} : vector<8x32xbf16>, vector<32x32xbf16>, vector<8x32xf32> -> vector<8x32xf32>
      %89 = arith.truncf %88 : vector<8x32xf32> to vector<8x32xbf16>
      %c0_56 = arith.constant 0 : index
      %c0_57 = arith.constant 0 : index
      %c0_58 = arith.constant 0 : index
      %90 = vector.load %arg14[%c0_56, %c0_57, %c0_58] : memref<1x8x32xbf16, #tpu.memory_space<vmem>>, vector<1x8x32xbf16>
      %91 = vector.shape_cast %90 : vector<1x8x32xbf16> to vector<8x32xbf16>
      %92 = vector.shape_cast %89 : vector<8x32xbf16> to vector<1x8x32xbf16>
      tpu.vector_store %arg14[%c0_56, %c0_57, %c0_58], %92 {strides = array<i32>} : memref<1x8x32xbf16, #tpu.memory_space<vmem>>, vector<1x8x32xbf16>,
    } else {
    }
    return
  }
  func.func @transform_0(%arg0: i32, %arg1: i32) -> (i32, i32, i32) {
    %c0_i32 = arith.constant 0 : i32
    %c0_i32_0 = arith.constant 0 : i32
    %c0_i32_1 = arith.constant 0 : i32
    return %arg1, %c0_i32, %c0_i32_0 : i32, i32, i32
  }
  func.func @transform_1(%arg0: i32, %arg1: i32) -> (i32, i32, i32) {
    %c0_i32 = arith.constant 0 : i32
    %c0_i32_0 = arith.constant 0 : i32
    %c0_i32_1 = arith.constant 0 : i32
    return %c0_i32, %arg0, %c0_i32_0 : i32, i32, i32
  }
  func.func @transform_2(%arg0: i32, %arg1: i32) -> (i32, i32, i32) {
    %c0_i32 = arith.constant 0 : i32
    %c0_i32_0 = arith.constant 0 : i32
    %c0_i32_1 = arith.constant 0 : i32
    return %c0_i32, %arg0, %c0_i32_0 : i32, i32, i32
  }
  func.func @transform_3(%arg0: i32, %arg1: i32) -> (i32, i32, i32) {
    %c0_i32 = arith.constant 0 : i32
    %c0_i32_0 = arith.constant 0 : i32
    return %arg1, %arg0, %c0_i32 : i32, i32, i32
  }
  func.func @transform_4(%arg0: i32, %arg1: i32) -> (i32, i32) {
    %c0_i32 = arith.constant 0 : i32
    %c0_i32_0 = arith.constant 0 : i32
    %c0_i32_1 = arith.constant 0 : i32
    return %c0_i32, %c0_i32_0 : i32, i32
  }
  func.func @transform_5(%arg0: i32, %arg1: i32) -> (i32, i32) {
    %c0_i32 = arith.constant 0 : i32
    %c0_i32_0 = arith.constant 0 : i32
    %c0_i32_1 = arith.constant 0 : i32
    return %c0_i32, %c0_i32_0 : i32, i32
  }
  func.func @transform_6(%arg0: i32, %arg1: i32) -> (i32, i32) {
    %c0_i32 = arith.constant 0 : i32
    %c0_i32_0 = arith.constant 0 : i32
    %c0_i32_1 = arith.constant 0 : i32
    return %c0_i32, %c0_i32_0 : i32, i32
  }
  func.func @transform_7(%arg0: i32, %arg1: i32) -> (i32, i32) {
    %c0_i32 = arith.constant 0 : i32
    %c0_i32_0 = arith.constant 0 : i32
    %c0_i32_1 = arith.constant 0 : i32
    return %c0_i32, %c0_i32_0 : i32, i32
  }
  func.func @transform_8(%arg0: i32, %arg1: i32) -> (i32, i32) {
    %c0_i32 = arith.constant 0 : i32
    %c0_i32_0 = arith.constant 0 : i32
    %c0_i32_1 = arith.constant 0 : i32
    return %c0_i32, %c0_i32_0 : i32, i32
  }
  func.func @transform_9(%arg0: i32, %arg1: i32) -> (i32, i32) {
    %c0_i32 = arith.constant 0 : i32
    %c0_i32_0 = arith.constant 0 : i32
    %c0_i32_1 = arith.constant 0 : i32
    return %c0_i32, %c0_i32_0 : i32, i32
  }
  func.func @transform_10(%arg0: i32, %arg1: i32) -> (i32, i32, i32) {
    %c0_i32 = arith.constant 0 : i32
    %c0_i32_0 = arith.constant 0 : i32
    %c0_i32_1 = arith.constant 0 : i32
    return %arg1, %c0_i32, %c0_i32_0 : i32, i32, i32
  }
  func.func @transform_11(%arg0: i32, %arg1: i32) -> (i32, i32, i32) {
    %c0_i32 = arith.constant 0 : i32
    %c0_i32_0 = arith.constant 0 : i32
    %c0_i32_1 = arith.constant 0 : i32
    return %arg1, %c0_i32, %c0_i32_0 : i32, i32, i32
  }
  func.func @transform_12(%arg0: i32, %arg1: i32) -> (i32, i32, i32) {
    %c0_i32 = arith.constant 0 : i32
    %c0_i32_0 = arith.constant 0 : i32
    %c0_i32_1 = arith.constant 0 : i32
    return %arg1, %c0_i32, %c0_i32_0 : i32, i32, i32
  }
}

</mosaic_0001>

<llo_original>
// kernel: tpu_custom_call.1
$region0: #{tpu_custom_call.1}
  #allocation0 [shape = 'u32[]', space=smem, size = 0x4, offset = 0x4, fixed_abs, tag = 'smem constant byte address 0x4 - core index']
  #allocation1 [shape = 'u32[144,128]{1,0:T(1,128)}', space=vmem, size = 0x12000, scoped, tag = 'internal scratch']
  #allocation2 [shape = 'bf16[2,8,32]{2,1,0:T(8,128)(2,1)}', space=vmem, size = 0x1000, scoped, tag = 'scratch operand']
  #allocation3 [shape = 'f32[2,8,1]{2,1,0:T(8,128)}', space=vmem, size = 0x2000, scoped, tag = 'scratch operand']
  #allocation4 [shape = 'f32[2,8,1]{2,1,0:T(8,128)}', space=vmem, size = 0x2000, scoped, tag = 'scratch operand']
  #allocation5 [shape = 'f32[2,8,32]{2,1,0:T(8,128)}', space=vmem, size = 0x2000, scoped, tag = 'scratch operand']
  %s0 = inlined_call_operand.vmem [shape: f32[2,8,32], index: 0, kind: input, shape index: {}]
  %s1 = inlined_call_operand.vmem [shape: bf16[1,64,32], index: 1, kind: input, shape index: {}]
  %s2 = inlined_call_operand.vmem [shape: bf16[1,64,32], index: 2, kind: input, shape index: {}]
  %s3 = inlined_call_operand.vmem [shape: bf16[2,64,32], index: 3, kind: input, shape index: {}]
  %s4 = inlined_call_operand.vmem [shape: bf16[32,32], index: 4, kind: input, shape index: {}]
  %s5 = inlined_call_operand.vmem [shape: bf16[32,32], index: 5, kind: input, shape index: {}]
  %s6 = inlined_call_operand.vmem [shape: bf16[32,32], index: 6, kind: input, shape index: {}]
  %s7 = inlined_call_operand.vmem [shape: bf16[32,32], index: 7, kind: input, shape index: {}]
  %s8 = inlined_call_operand.vmem [shape: bf16[32,32], index: 8, kind: input, shape index: {}]
  %s9 = inlined_call_operand.vmem [shape: bf16[32,32], index: 9, kind: input, shape index: {}]
  %s10 = inlined_call_operand.hbm [shape: f32[2,8,32], index: 10, kind: output, shape index: {0}]
  %s11 = inlined_call_operand.hbm [shape: bf16[2,8,32], index: 11, kind: output, shape index: {1}]
  %s12 = inlined_call_operand.hbm [shape: bf16[2,8,32], index: 12, kind: output, shape index: {2}]
  %13 = xla_tuple %s10, %s11, %s12
  %s14 = sld [smem:[#allocation0]]
  $region97: #{tpu_custom_call.1} parent=0
    _
  %s16 = ssub.s32 1, %s14
  %s17 = scalar_select 0, %s16, %s14
  $region1: #{tpu_custom_call.1} parent=0
    #allocation6 [shape = 'u8[8192]{0}', space=vmem, size = 0x2000, scoped, tag = 'output window, operand 0']
    #allocation7 [shape = 's32[2]{0}', space=sflag, size = 0x8, scoped, tag = 'scoped memory for tpu_custom_call.1']
    #allocation8 [shape = 'u8[4096]{0}', space=vmem, size = 0x1000, scoped, tag = 'output window, operand 1']
    #allocation9 [shape = 's32[2]{0}', space=sflag, size = 0x8, scoped, tag = 'scoped memory for tpu_custom_call.1']
    #allocation10 [shape = 'u8[4096]{0}', space=vmem, size = 0x1000, scoped, tag = 'output window, operand 2']
    %18 = vsyncpa [#allocation7], 0
    %s19 = scalar_lea.sflag [#allocation7], 1
    %20 = vsyncpa %s19, 0
    %21 = vsyncpa [#allocation9], 0
    %s22 = scalar_lea.sflag [#allocation9], 1
    %23 = vsyncpa %s22, 0
    loop: start=0, step=1, limit=4
    $region2: #{tpu_custom_call.1} parent=1 // loop_pre_header
      _
    $region3: #{tpu_custom_call.1} parent=1 // loop_header
      %s25 = sphi 0, %s29
      %p26 = scmp.ge.s32.totalorder %s25, 4
      %s32 = sphi 0, %s44
      %s33 = sphi 0, %s40
      %s34 = sphi 0, %s32
      %s35 = sphi 0, %s33
      %s36 = sphi 0, %s34
      %s37 = sphi 0, %s35
      %s47 = sphi 0, %s49
      %s50 = sphi 0, %s47
      %s51 = sphi 0, %s50
      %s67 = sphi 0, %s51
      %s73 = sphi 0, %s75
      %s76 = sphi 0, %s73
      %s77 = sphi 0, %s76
      %s93 = sphi 0, %s77
      %s99 = sphi 0, %s101
      %s102 = sphi 0, %s99
      %s103 = sphi 0, %s102
      %s119 = sphi 0, %s103
      %s127 = sphi 0, %s129
      %s130 = sphi 0, %s127
      %s131 = sphi 0, %s130
      %s147 = sphi 0, %s131
      %s151 = sphi 0, %s151
      %s153 = sphi 0, %s151
      %s154 = sphi 0, %s153
      %s168 = sphi 0, %s154
      %s172 = sphi 0, %s172
      %s174 = sphi 0, %s172
      %s175 = sphi 0, %s174
      %s189 = sphi 0, %s175
      %s193 = sphi 0, %s193
      %s195 = sphi 0, %s193
      %s196 = sphi 0, %s195
      %s210 = sphi 0, %s196
      %s214 = sphi 0, %s214
      %s216 = sphi 0, %s214
      %s217 = sphi 0, %s216
      %s231 = sphi 0, %s217
      %s235 = sphi 0, %s235
      %s237 = sphi 0, %s235
      %s238 = sphi 0, %s237
      %s252 = sphi 0, %s238
      %s256 = sphi 0, %s256
      %s258 = sphi 0, %s256
      %s259 = sphi 0, %s258
      %s273 = sphi 0, %s259
      %s279 = sphi 0, %s281
      %s282 = sphi 0, %s279
      %s283 = sphi 0, %s282
      %s299 = sphi 0, %s283
      %s305 = sphi 0, %s307
      %s308 = sphi 0, %s305
      %s309 = sphi 0, %s308
      %s325 = sphi 0, %s309
      %s331 = sphi 0, %s333
      %s334 = sphi 0, %s331
      %s335 = sphi 0, %s334
      %s351 = sphi 0, %s335
    $region4: #{tpu_custom_call.1} parent=1 // loop_header_branch
      %28 = sbr.rel (%p26) target = $region8
    $region5: #{tpu_custom_call.1} parent=1 // loop_body
      %s30 = ssub.s32 %s25, 1
      %s31 = ssub.s32 %s25, 2
      %s38 = sadd.s32 1, %s33
      %p39 = scmp.ge.s32.totalorder %s38, 2
      %s40 = scalar_select %p39, 0, %s38
      %s41 = sadd.s32 1, %s32
      %s42 = scalar_select %p39, %s41, %s32
      %p43 = scmp.ge.s32.totalorder %s42, 1
      %s44 = scalar_select %p43, 0, %s42
      %s45 = ssub.s32 %s33, %s40
      %p46 = scmp.eq.s32.totalorder %s45, 0
      %s48 = sadd.s32 %s47, 1
      %s49 = scalar_select %p46, %s47, %s48
      %p52 = pneg %p46
      %p53 = scmp.eq.s32.totalorder %s25, 1
      %p54 = por %p52, %p53
      %p55 = scmp.ne.s32.totalorder %s47, %s50
      %p56 = scmp.eq.s32.totalorder %s25, 0
      %p57 = por %p55, %p56
      %p58 = scmp.ne.s32.totalorder %s47, %s50
      %p59 = scmp.eq.s32.totalorder %s30, 1
      %p60 = por %p58, %p59
      %p61 = scmp.ne.s32.totalorder %s50, %s51
      %p62 = scmp.eq.s32.totalorder %s30, 0
      %p63 = por %p61, %p62
      %p64 = scmp.ne.s32.totalorder %s50, %s51
      %p65 = scmp.eq.s32.totalorder %s31, 1
      %p66 = por %p64, %p65
      %p68 = scmp.ne.s32.totalorder %s51, %s67
      %p69 = scmp.eq.s32.totalorder %s31, 0
      %p70 = por %p68, %p69
      %s71 = ssub.s32 %s32, %s44
      %p72 = scmp.eq.s32.totalorder %s71, 0
      %s74 = sadd.s32 %s73, 1
      %s75 = scalar_select %p72, %s73, %s74
      %p78 = pneg %p72
      %p79 = scmp.eq.s32.totalorder %s25, 1
      %p80 = por %p78, %p79
      %p81 = scmp.ne.s32.totalorder %s73, %s76
      %p82 = scmp.eq.s32.totalorder %s25, 0
      %p83 = por %p81, %p82
      %p84 = scmp.ne.s32.totalorder %s73, %s76
      %p85 = scmp.eq.s32.totalorder %s30, 1
      %p86 = por %p84, %p85
      %p87 = scmp.ne.s32.totalorder %s76, %s77
      %p88 = scmp.eq.s32.totalorder %s30, 0
      %p89 = por %p87, %p88
      %p90 = scmp.ne.s32.totalorder %s76, %s77
      %p91 = scmp.eq.s32.totalorder %s31, 1
      %p92 = por %p90, %p91
      %p94 = scmp.ne.s32.totalorder %s77, %s93
      %p95 = scmp.eq.s32.totalorder %s31, 0
      %p96 = por %p94, %p95
      %s97 = ssub.s32 %s32, %s44
      %p98 = scmp.eq.s32.totalorder %s97, 0
      %s100 = sadd.s32 %s99, 1
      %s101 = scalar_select %p98, %s99, %s100
      %p104 = pneg %p98
      %p105 = scmp.eq.s32.totalorder %s25, 1
      %p106 = por %p104, %p105
      %p107 = scmp.ne.s32.totalorder %s99, %s102
      %p108 = scmp.eq.s32.totalorder %s25, 0
      %p109 = por %p107, %p108
      %p110 = scmp.ne.s32.totalorder %s99, %s102
      %p111 = scmp.eq.s32.totalorder %s30, 1
      %p112 = por %p110, %p111
      %p113 = scmp.ne.s32.totalorder %s102, %s103
      %p114 = scmp.eq.s32.totalorder %s30, 0
      %p115 = por %p113, %p114
      %p116 = scmp.ne.s32.totalorder %s102, %s103
      %p117 = scmp.eq.s32.totalorder %s31, 1
      %p118 = por %p116, %p117
      %p120 = scmp.ne.s32.totalorder %s103, %s119
      %p121 = scmp.eq.s32.totalorder %s31, 0
      %p122 = por %p120, %p121
      %s123 = ssub.s32 %s33, %s40
      %s124 = ssub.s32 %s32, %s44
      %s125 = sor.u32 %s123, %s124
      %p126 = scmp.eq.s32.totalorder %s125, 0
      %s128 = sadd.s32 %s127, 1
      %s129 = scalar_select %p126, %s127, %s128
      %p132 = pneg %p126
      %p133 = scmp.eq.s32.totalorder %s25, 1
      %p134 = por %p132, %p133
      %p135 = scmp.ne.s32.totalorder %s127, %s130
      %p136 = scmp.eq.s32.totalorder %s25, 0
      %p137 = por %p135, %p136
      %p138 = scmp.ne.s32.totalorder %s127, %s130
      %p139 = scmp.eq.s32.totalorder %s30, 1
      %p140 = por %p138, %p139
      %p141 = scmp.ne.s32.totalorder %s130, %s131
      %p142 = scmp.eq.s32.totalorder %s30, 0
      %p143 = por %p141, %p142
      %p144 = scmp.ne.s32.totalorder %s130, %s131
      %p145 = scmp.eq.s32.totalorder %s31, 1
      %p146 = por %p144, %p145
      %p148 = scmp.ne.s32.totalorder %s131, %s147
      %p149 = scmp.eq.s32.totalorder %s31, 0
      %p150 = por %p148, %p149
      %s152 = sadd.s32 %s151, 1
      %p155 = scmp.eq.s32.totalorder %s25, 1
      %p156 = scmp.ne.s32.totalorder %s151, %s153
      %p157 = scmp.eq.s32.totalorder %s25, 0
      %p158 = por %p156, %p157
      %p159 = scmp.ne.s32.totalorder %s151, %s153
      %p160 = scmp.eq.s32.totalorder %s30, 1
      %p161 = por %p159, %p160
      %p162 = scmp.ne.s32.totalorder %s153, %s154
      %p163 = scmp.eq.s32.totalorder %s30, 0
      %p164 = por %p162, %p163
      %p165 = scmp.ne.s32.totalorder %s153, %s154
      %p166 = scmp.eq.s32.totalorder %s31, 1
      %p167 = por %p165, %p166
      %p169 = scmp.ne.s32.totalorder %s154, %s168
      %p170 = scmp.eq.s32.totalorder %s31, 0
      %p171 = por %p169, %p170
      %s173 = sadd.s32 %s172, 1
      %p176 = scmp.eq.s32.totalorder %s25, 1
      %p177 = scmp.ne.s32.totalorder %s172, %s174
      %p178 = scmp.eq.s32.totalorder %s25, 0
      %p179 = por %p177, %p178
      %p180 = scmp.ne.s32.totalorder %s172, %s174
      %p181 = scmp.eq.s32.totalorder %s30, 1
      %p182 = por %p180, %p181
      %p183 = scmp.ne.s32.totalorder %s174, %s175
      %p184 = scmp.eq.s32.totalorder %s30, 0
      %p185 = por %p183, %p184
      %p186 = scmp.ne.s32.totalorder %s174, %s175
      %p187 = scmp.eq.s32.totalorder %s31, 1
      %p188 = por %p186, %p187
      %p190 = scmp.ne.s32.totalorder %s175, %s189
      %p191 = scmp.eq.s32.totalorder %s31, 0
      %p192 = por %p190, %p191
      %s194 = sadd.s32 %s193, 1
      %p197 = scmp.eq.s32.totalorder %s25, 1
      %p198 = scmp.ne.s32.totalorder %s193, %s195
      %p199 = scmp.eq.s32.totalorder %s25, 0
      %p200 = por %p198, %p199
      %p201 = scmp.ne.s32.totalorder %s193, %s195
      %p202 = scmp.eq.s32.totalorder %s30, 1
      %p203 = por %p201, %p202
      %p204 = scmp.ne.s32.totalorder %s195, %s196
      %p205 = scmp.eq.s32.totalorder %s30, 0
      %p206 = por %p204, %p205
      %p207 = scmp.ne.s32.totalorder %s195, %s196
      %p208 = scmp.eq.s32.totalorder %s31, 1
      %p209 = por %p207, %p208
      %p211 = scmp.ne.s32.totalorder %s196, %s210
      %p212 = scmp.eq.s32.totalorder %s31, 0
      %p213 = por %p211, %p212
      %s215 = sadd.s32 %s214, 1
      %p218 = scmp.eq.s32.totalorder %s25, 1
      %p219 = scmp.ne.s32.totalorder %s214, %s216
      %p220 = scmp.eq.s32.totalorder %s25, 0
      %p221 = por %p219, %p220
      %p222 = scmp.ne.s32.totalorder %s214, %s216
      %p223 = scmp.eq.s32.totalorder %s30, 1
      %p224 = por %p222, %p223
      %p225 = scmp.ne.s32.totalorder %s216, %s217
      %p226 = scmp.eq.s32.totalorder %s30, 0
      %p227 = por %p225, %p226
      %p228 = scmp.ne.s32.totalorder %s216, %s217
      %p229 = scmp.eq.s32.totalorder %s31, 1
      %p230 = por %p228, %p229
      %p232 = scmp.ne.s32.totalorder %s217, %s231
      %p233 = scmp.eq.s32.totalorder %s31, 0
      %p234 = por %p232, %p233
      %s236 = sadd.s32 %s235, 1
      %p239 = scmp.eq.s32.totalorder %s25, 1
      %p240 = scmp.ne.s32.totalorder %s235, %s237
      %p241 = scmp.eq.s32.totalorder %s25, 0
      %p242 = por %p240, %p241
      %p243 = scmp.ne.s32.totalorder %s235, %s237
      %p244 = scmp.eq.s32.totalorder %s30, 1
      %p245 = por %p243, %p244
      %p246 = scmp.ne.s32.totalorder %s237, %s238
      %p247 = scmp.eq.s32.totalorder %s30, 0
      %p248 = por %p246, %p247
      %p249 = scmp.ne.s32.totalorder %s237, %s238
      %p250 = scmp.eq.s32.totalorder %s31, 1
      %p251 = por %p249, %p250
      %p253 = scmp.ne.s32.totalorder %s238, %s252
      %p254 = scmp.eq.s32.totalorder %s31, 0
      %p255 = por %p253, %p254
      %s257 = sadd.s32 %s256, 1
      %p260 = scmp.eq.s32.totalorder %s25, 1
      %p261 = scmp.ne.s32.totalorder %s256, %s258
      %p262 = scmp.eq.s32.totalorder %s25, 0
      %p263 = por %p261, %p262
      %p264 = scmp.ne.s32.totalorder %s256, %s258
      %p265 = scmp.eq.s32.totalorder %s30, 1
      %p266 = por %p264, %p265
      %p267 = scmp.ne.s32.totalorder %s258, %s259
      %p268 = scmp.eq.s32.totalorder %s30, 0
      %p269 = por %p267, %p268
      %p270 = scmp.ne.s32.totalorder %s258, %s259
      %p271 = scmp.eq.s32.totalorder %s31, 1
      %p272 = por %p270, %p271
      %p274 = scmp.ne.s32.totalorder %s259, %s273
      %p275 = scmp.eq.s32.totalorder %s31, 0
      %p276 = por %p274, %p275
      %s277 = ssub.s32 %s33, %s40
      %p278 = scmp.eq.s32.totalorder %s277, 0
      %s280 = sadd.s32 %s279, 1
      %s281 = scalar_select %p278, %s279, %s280
      %p284 = pneg %p278
      %p285 = scmp.eq.s32.totalorder %s25, 1
      %p286 = por %p284, %p285
      %p287 = scmp.ne.s32.totalorder %s279, %s282
      %p288 = scmp.eq.s32.totalorder %s25, 0
      %p289 = por %p287, %p288
      %p290 = scmp.ne.s32.totalorder %s279, %s282
      %p291 = scmp.eq.s32.totalorder %s30, 1
      %p292 = por %p290, %p291
      %p293 = scmp.ne.s32.totalorder %s282, %s283
      %p294 = scmp.eq.s32.totalorder %s30, 0
      %p295 = por %p293, %p294
      %p296 = scmp.ne.s32.totalorder %s282, %s283
      %p297 = scmp.eq.s32.totalorder %s31, 1
      %p298 = por %p296, %p297
      %p300 = scmp.ne.s32.totalorder %s283, %s299
      %p301 = scmp.eq.s32.totalorder %s31, 0
      %p302 = por %p300, %p301
      %s303 = ssub.s32 %s33, %s40
      %p304 = scmp.eq.s32.totalorder %s303, 0
      %s306 = sadd.s32 %s305, 1
      %s307 = scalar_select %p304, %s305, %s306
      %p310 = pneg %p304
      %p311 = scmp.eq.s32.totalorder %s25, 1
      %p312 = por %p310, %p311
      %p313 = scmp.ne.s32.totalorder %s305, %s308
      %p314 = scmp.eq.s32.totalorder %s25, 0
      %p315 = por %p313, %p314
      %p316 = scmp.ne.s32.totalorder %s305, %s308
      %p317 = scmp.eq.s32.totalorder %s30, 1
      %p318 = por %p316, %p317
      %p319 = scmp.ne.s32.totalorder %s308, %s309
      %p320 = scmp.eq.s32.totalorder %s30, 0
      %p321 = por %p319, %p320
      %p322 = scmp.ne.s32.totalorder %s308, %s309
      %p323 = scmp.eq.s32.totalorder %s31, 1
      %p324 = por %p322, %p323
      %p326 = scmp.ne.s32.totalorder %s309, %s325
      %p327 = scmp.eq.s32.totalorder %s31, 0
      %p328 = por %p326, %p327
      %s329 = ssub.s32 %s33, %s40
      %p330 = scmp.eq.s32.totalorder %s329, 0
      %s332 = sadd.s32 %s331, 1
      %s333 = scalar_select %p330, %s331, %s332
      %p336 = pneg %p330
      %p337 = scmp.eq.s32.totalorder %s25, 1
      %p338 = por %p336, %p337
      %p339 = scmp.ne.s32.totalorder %s331, %s334
      %p340 = scmp.eq.s32.totalorder %s25, 0
      %p341 = por %p339, %p340
      %p342 = scmp.ne.s32.totalorder %s331, %s334
      %p343 = scmp.eq.s32.totalorder %s30, 1
      %p344 = por %p342, %p343
      %p345 = scmp.ne.s32.totalorder %s334, %s335
      %p346 = scmp.eq.s32.totalorder %s30, 0
      %p347 = por %p345, %p346
      %p348 = scmp.ne.s32.totalorder %s334, %s335
      %p349 = scmp.eq.s32.totalorder %s31, 1
      %p350 = por %p348, %p349
      %p352 = scmp.ne.s32.totalorder %s335, %s351
      %p353 = scmp.eq.s32.totalorder %s31, 0
      %p354 = por %p352, %p353
      %p355 = scmp.le.s32.totalorder 1, %s25
      %p356 = scmp.lt.s32.totalorder %s25, 3
      %p357 = pnand %p355, %p356
      %p358 = pneg %p357
      // Predicated region
      $region9: #{tpu_custom_call.1} parent=5 // pred_check
        _
      $region10: #{tpu_custom_call.1} parent=5 // pred_check_branch
        %360 = sbr.rel (%p357) target = $region12
      $region11: #{tpu_custom_call.1} parent=5 // pred_region
        %s361 = ssub.s32 %s25, 1
        // Predicated region
        $region13: #{tpu_custom_call.1} parent=11 // pred_check
          %p362 = pneg %p89
        $region14: #{tpu_custom_call.1} parent=11 // pred_check_branch
          %364 = sbr.rel (%p362) target = $region16
        $region15: #{tpu_custom_call.1} parent=11 // pred_region
          %s365 = smul.u32 8, %s34
          %p366 = scmp.lt.s32.totalorder %s365, 7
          %s367 = scalar_select %p366, %s365, 7
          %s368 = smul.addr %s367, 4
          %s369 = scalar_lea.vmem %s1, %s368
          %s370 = smul.u32 8, %s34
        $region16: #{tpu_custom_call.1} parent=11 // pred_fallthru
          _
        // Predicated region
        $region17: #{tpu_custom_call.1} parent=11 // pred_check
          %p371 = pneg %p115
        $region18: #{tpu_custom_call.1} parent=11 // pred_check_branch
          %373 = sbr.rel (%p371) target = $region20
        $region19: #{tpu_custom_call.1} parent=11 // pred_region
          %s374 = smul.u32 8, %s34
          %p375 = scmp.lt.s32.totalorder %s374, 7
          %s376 = scalar_select %p375, %s374, 7
          %s377 = smul.addr %s376, 4
          %s378 = scalar_lea.vmem %s2, %s377
          %s379 = smul.u32 8, %s34
        $region20: #{tpu_custom_call.1} parent=11 // pred_fallthru
          _
        // Predicated region
        $region21: #{tpu_custom_call.1} parent=11 // pred_check
          %p380 = pneg %p164
        $region22: #{tpu_custom_call.1} parent=11 // pred_check_branch
          %382 = sbr.rel (%p380) target = $region24
        $region23: #{tpu_custom_call.1} parent=11 // pred_region
          _
        $region24: #{tpu_custom_call.1} parent=11 // pred_fallthru
          _
        // Predicated region
        $region25: #{tpu_custom_call.1} parent=11 // pred_check
          %p383 = pneg %p185
        $region26: #{tpu_custom_call.1} parent=11 // pred_check_branch
          %385 = sbr.rel (%p383) target = $region28
        $region27: #{tpu_custom_call.1} parent=11 // pred_region
          _
        $region28: #{tpu_custom_call.1} parent=11 // pred_fallthru
          _
        // Predicated region
        $region29: #{tpu_custom_call.1} parent=11 // pred_check
          %p386 = pneg %p206
        $region30: #{tpu_custom_call.1} parent=11 // pred_check_branch
          %388 = sbr.rel (%p386) target = $region32
        $region31: #{tpu_custom_call.1} parent=11 // pred_region
          _
        $region32: #{tpu_custom_call.1} parent=11 // pred_fallthru
          _
        // Predicated region
        $region33: #{tpu_custom_call.1} parent=11 // pred_check
          %p389 = pneg %p227
        $region34: #{tpu_custom_call.1} parent=11 // pred_check_branch
          %391 = sbr.rel (%p389) target = $region36
        $region35: #{tpu_custom_call.1} parent=11 // pred_region
          _
        $region36: #{tpu_custom_call.1} parent=11 // pred_fallthru
          _
        // Predicated region
        $region37: #{tpu_custom_call.1} parent=11 // pred_check
          %p392 = pneg %p248
        $region38: #{tpu_custom_call.1} parent=11 // pred_check_branch
          %394 = sbr.rel (%p392) target = $region40
        $region39: #{tpu_custom_call.1} parent=11 // pred_region
          _
        $region40: #{tpu_custom_call.1} parent=11 // pred_fallthru
          _
        // Predicated region
        $region41: #{tpu_custom_call.1} parent=11 // pred_check
          %p395 = pneg %p269
        $region42: #{tpu_custom_call.1} parent=11 // pred_check_branch
          %397 = sbr.rel (%p395) target = $region44
        $region43: #{tpu_custom_call.1} parent=11 // pred_region
          _
        $region44: #{tpu_custom_call.1} parent=11 // pred_fallthru
          _
      $region12: #{tpu_custom_call.1} parent=5 // pred_fallthru
        _
      %p398 = scmp.lt.s32.totalorder %s25, 2
      // Predicated region
      $region45: #{tpu_custom_call.1} parent=5 // pred_check
        %p399 = pneg %p398
      $region46: #{tpu_custom_call.1} parent=5 // pred_check_branch
        %401 = sbr.rel (%p399) target = $region48
      $region47: #{tpu_custom_call.1} parent=5 // pred_region
        // Predicated region
        $region49: #{tpu_custom_call.1} parent=47 // pred_check
          %p402 = pneg %p57
        $region50: #{tpu_custom_call.1} parent=47 // pred_check_branch
          %404 = sbr.rel (%p402) target = $region52
        $region51: #{tpu_custom_call.1} parent=47 // pred_region
          %p405 = scmp.lt.s32.totalorder %s33, 1
          %s406 = scalar_select %p405, %s33, 1
          %s407 = smul.addr %s406, 8
          %s408 = scalar_lea.vmem %s0, %s407
        $region52: #{tpu_custom_call.1} parent=47 // pred_fallthru
          _
        // Predicated region
        $region53: #{tpu_custom_call.1} parent=47 // pred_check
          %p409 = pneg %p137
        $region54: #{tpu_custom_call.1} parent=47 // pred_check_branch
          %411 = sbr.rel (%p409) target = $region56
        $region55: #{tpu_custom_call.1} parent=47 // pred_region
          %s412 = smul.u32 8, %s32
          %p413 = scmp.lt.s32.totalorder %s33, 1
          %s414 = scalar_select %p413, %s33, 1
          %p415 = scmp.lt.s32.totalorder %s412, 7
          %s416 = scalar_select %p415, %s412, 7
          %s417 = smul.addr %s414, 8
          %s418 = sadd.s32 %s416, %s417
          %s419 = smul.addr %s418, 4
          %s420 = scalar_lea.vmem %s3, %s419
          %s421 = smul.u32 8, %s32
        $region56: #{tpu_custom_call.1} parent=47 // pred_fallthru
          _
      $region48: #{tpu_custom_call.1} parent=5 // pred_fallthru
        _
      %p422 = scmp.le.s32.totalorder 1, %s25
      %p423 = scmp.lt.s32.totalorder %s25, 3
      %p424 = pnand %p422, %p423
      %p425 = pneg %p424
      // Predicated region
      $region57: #{tpu_custom_call.1} parent=5 // pred_check
        _
      $region58: #{tpu_custom_call.1} parent=5 // pred_check_branch
        %427 = sbr.rel (%p424) target = $region60
      $region59: #{tpu_custom_call.1} parent=5 // pred_region
        %s428 = ssub.s32 %s25, 1
        %p429 = scmp.lt.s32.totalorder %s35, 1
        %s430 = scalar_select %p429, %s35, 1
        %s431 = smul.addr %s430, 8
        %s432 = scalar_lea.vmem %s0, %s431
        %p433 = pneg %p63
        %p434 = pneg %p60
        %s435 = smul.u32 8, %s34
        %p436 = scmp.lt.s32.totalorder %s435, 7
        %s437 = scalar_select %p436, %s435, 7
        %s438 = smul.addr %s437, 4
        %s439 = scalar_lea.vmem %s1, %s438
        %p440 = pneg %p89
        %p441 = pneg %p86
        %s442 = smul.u32 8, %s34
        %p443 = scmp.lt.s32.totalorder %s442, 7
        %s444 = scalar_select %p443, %s442, 7
        %s445 = smul.addr %s444, 4
        %s446 = scalar_lea.vmem %s2, %s445
        %p447 = pneg %p115
        %p448 = pneg %p112
        %s449 = smul.u32 8, %s34
        %p450 = scmp.lt.s32.totalorder %s35, 1
        %s451 = scalar_select %p450, %s35, 1
        %p452 = scmp.lt.s32.totalorder %s449, 7
        %s453 = scalar_select %p452, %s449, 7
        %s454 = smul.addr %s451, 8
        %s455 = sadd.s32 %s453, %s454
        %s456 = smul.addr %s455, 4
        %s457 = scalar_lea.vmem %s3, %s456
        %p458 = pneg %p143
        %p459 = pneg %p140
        %p460 = pneg %p164
        %p461 = pneg %p161
        %p462 = pneg %p185
        %p463 = pneg %p182
        %p464 = pneg %p206
        %p465 = pneg %p203
        %p466 = pneg %p227
        %p467 = pneg %p224
        %p468 = pneg %p248
        %p469 = pneg %p245
        %p470 = pneg %p269
        %p471 = pneg %p266
        %p472 = pneg %p295
        %p473 = pneg %p292
        %s474 = sand.u32 %s282, 1
        %s475 = scalar_lea.sflag [#allocation7], %s474
        %s476 = sand.u32 %s282, 1
        %s477 = smul.addr %s476, 8
        %s478 = scalar_lea.vmem [#allocation6], %s477
        %p479 = pneg %p321
        %p480 = pneg %p318
        %s481 = sand.u32 %s30, 1
        %s482 = scalar_lea.sflag [#allocation9], %s481
        %s483 = sand.u32 %s308, 1
        %s484 = smul.addr %s483, 4
        %s485 = scalar_lea.vmem [#allocation8], %s484
        %p486 = pneg %p347
        %p487 = pneg %p344
        %s488 = sand.u32 %s30, 1
        %s489 = scalar_lea.sflag [#allocation9], %s488
        %s490 = sand.u32 %s334, 1
        %s491 = smul.addr %s490, 4
        %s492 = scalar_lea.vmem [#allocation10], %s491
        %p493 = scmp.lt.s32.totalorder %s35, 1
        %s494 = scalar_select %p493, %s35, 1
        %s495 = smul.addr %s494, 8
        %s496 = scalar_lea.vmem %s0, %s495
        %s497 = smul.u32 8, %s34
        %p498 = scmp.lt.s32.totalorder %s497, 7
        %s499 = scalar_select %p498, %s497, 7
        %s500 = smul.addr %s499, 4
        %s501 = scalar_lea.vmem %s1, %s500
        %s502 = smul.u32 8, %s34
        %s503 = smul.u32 8, %s34
        %p504 = scmp.lt.s32.totalorder %s503, 7
        %s505 = scalar_select %p504, %s503, 7
        %s506 = smul.addr %s505, 4
        %s507 = scalar_lea.vmem %s2, %s506
        %s508 = smul.u32 8, %s34
        %s509 = smul.u32 8, %s34
        %p510 = scmp.lt.s32.totalorder %s35, 1
        %s511 = scalar_select %p510, %s35, 1
        %p512 = scmp.lt.s32.totalorder %s509, 7
        %s513 = scalar_select %p512, %s509, 7
        %s514 = smul.addr %s511, 8
        %s515 = sadd.s32 %s513, %s514
        %s516 = smul.addr %s515, 4
        %s517 = scalar_lea.vmem %s3, %s516
        %s518 = smul.u32 8, %s34
        %p520 = scmp.eq.s32.totalorder %s34, 0
        // Predicated region
        $region61: #{tpu_custom_call.1} parent=59 // pred_check
          %p521 = pneg %p520
        $region62: #{tpu_custom_call.1} parent=59 // pred_check_branch
          %523 = sbr.rel (%p521) target = $region64
        $region63: #{tpu_custom_call.1} parent=59 // pred_region
          %v524 = vld [vmem:[%s496] sm:$0xff]
          %v525 = vpack.c.bf16 %v524, %v524
          %v526 = vld [vmem:[%s4] sm:$0xf]
          %v527 = vld [vmem:[%s4 + $0x4] sm:$0xf]
          %v528 = vld [vmem:[%s4 + $0x8] sm:$0xf]
          %v529 = vld [vmem:[%s4 + $0xc] sm:$0xf]
          %v534 = vunpack.c.l.b16 %v526
          %v535 = vunpack.c.l.b16 %v527
          %v536 = vunpack.c.l.b16 %v528
          %v537 = vunpack.c.l.b16 %v529
          %v538 = vpack.c.b16 %v535, %v534
          %v539 = vpack.c.b16 %v537, %v536
          %vm542 = vcmask 261120
          %v544 = vsel %vm542, %v525, 0
          %546 = vmatprep.subr.bf16.mxu0 0
          %547 = vmatpush1.bf16.msra.mxu0 %v538
          %548 = vmatprep.subr.bf16.mxu0 0
          %549 = vmatpush1.bf16.msra.mxu0 %v539
          %550 = vmatprep.subr.bf16.mxu0 0
          %551 = vmatpush1.bf16.msra.mxu0 0
          %552 = vmatprep.subr.bf16.mxu0 0
          %553 = vmatpush1.bf16.msra.mxu0 0
          %554 = vmatprep.subr.bf16.mxu0 0
          %555 = vmatpush1.bf16.msra.mxu0 0
          %556 = vmatprep.subr.bf16.mxu0 0
          %557 = vmatpush1.bf16.msra.mxu0 0
          %558 = vmatprep.subr.bf16.mxu0 0
          %559 = vmatpush1.bf16.msra.mxu0 0
          %560 = vmatprep.subr.bf16.mxu0 0
          %561 = vmatpush1.bf16.msra.mxu0 0
          %562 = vmatprep.subr.bf16.mxu0 0
          %563 = vmatpush1.bf16.msra.mxu0 0
          %564 = vmatprep.subr.bf16.mxu0 0
          %565 = vmatpush1.bf16.msra.mxu0 0
          %566 = vmatprep.subr.bf16.mxu0 0
          %567 = vmatpush1.bf16.msra.mxu0 0
          %568 = vmatprep.subr.bf16.mxu0 0
          %569 = vmatpush1.bf16.msra.mxu0 0
          %570 = vmatprep.subr.bf16.mxu0 0
          %571 = vmatpush1.bf16.msra.mxu0 0
          %572 = vmatprep.subr.bf16.mxu0 0
          %573 = vmatpush1.bf16.msra.mxu0 0
          %574 = vmatprep.subr.bf16.mxu0 0
          %575 = vmatpush1.bf16.msra.mxu0 0
          %576 = vmatprep.subr.bf16.mxu0 0
          %577 = vmatpush1.bf16.msra.mxu0 0
          %578 = vmatprep.mubr.bf16.mxu0 0
          %579 = vmatmul.mubr.bf16.gmra.mrb[0].mxu0 %v544
          %v580 = vpop.f32.mrb[0].mxu0
          %v581 = vadd.f32 0.0, %v580
          %v582 = vpop.f32.mrb[0].mxu0
          %v583 = vpop.f32.mrb[0].mxu0
          %v584 = vpop.f32.mrb[0].mxu0
          %585 = vdwg.mxu0
          %v586 = vpack.c.bf16 %v581, %v581
          %s587 = smul.addr %s35, 4
          %s588 = scalar_lea.vmem [#allocation2], %s587
          %vm589 = vcmask 257024
          %590 = vst.msk [vmem:[%s588] sm:$0xf] %vm589, %v586
          %s591 = smul.u32 %s35, 8
          %s592 = scalar_lea.vmem [#allocation3], %s591
          %vm593 = vcmask 7168
          %594 = vst.msk [vmem:[%s592] sm:$0xff] %vm593, -inf
          %s595 = scalar_lea.vmem [#allocation4], %s591
          %596 = vst.msk [vmem:[%s595] sm:$0xff] %vm593, 0.0
          %s597 = scalar_lea.vmem [#allocation5], %s591
          %598 = vst.msk [vmem:[%s597] sm:$0xff] %vm542, 0.0
        $region64: #{tpu_custom_call.1} parent=59 // pred_fallthru
          _
        %v599 = vld [vmem:[%s501] sm:$0xf]
        %v600 = vld [vmem:[%s501 + $0x4] sm:$0xf]
        %v601 = vld [vmem:[%s501 + $0x8] sm:$0xf]
        %v602 = vld [vmem:[%s501 + $0xc] sm:$0xf]
        %v603 = vld [vmem:[%s501 + $0x10] sm:$0xf]
        %v604 = vld [vmem:[%s501 + $0x14] sm:$0xf]
        %v605 = vld [vmem:[%s501 + $0x18] sm:$0xf]
        %v606 = vld [vmem:[%s501 + $0x1c] sm:$0xf]
        %v607 = vld [vmem:[%s517] sm:$0xf]
        %v608 = vld [vmem:[%s517 + $0x4] sm:$0xf]
        %v609 = vld [vmem:[%s517 + $0x8] sm:$0xf]
        %v610 = vld [vmem:[%s517 + $0xc] sm:$0xf]
        %v611 = vld [vmem:[%s517 + $0x10] sm:$0xf]
        %v612 = vld [vmem:[%s517 + $0x14] sm:$0xf]
        %v613 = vld [vmem:[%s517 + $0x18] sm:$0xf]
        %v614 = vld [vmem:[%s517 + $0x1c] sm:$0xf]
        %v615 = vadd.bf16 %v599, %v607
        %v616 = vadd.bf16 %v600, %v608
        %v617 = vadd.bf16 %v601, %v609
        %v618 = vadd.bf16 %v602, %v610
        %v619 = vadd.bf16 %v603, %v611
        %v620 = vadd.bf16 %v604, %v612
        %v621 = vadd.bf16 %v605, %v613
        %v622 = vadd.bf16 %v606, %v614
        %v623 = vld [vmem:[%s507] sm:$0xf]
        %v624 = vld [vmem:[%s507 + $0x4] sm:$0xf]
        %v625 = vld [vmem:[%s507 + $0x8] sm:$0xf]
        %v626 = vld [vmem:[%s507 + $0xc] sm:$0xf]
        %v627 = vld [vmem:[%s507 + $0x10] sm:$0xf]
        %v628 = vld [vmem:[%s507 + $0x14] sm:$0xf]
        %v629 = vld [vmem:[%s507 + $0x18] sm:$0xf]
        %v630 = vld [vmem:[%s507 + $0x1c] sm:$0xf]
        %v631 = vadd.bf16 %v615, %v623
        %v632 = vadd.bf16 %v616, %v624
        %v633 = vadd.bf16 %v617, %v625
        %v634 = vadd.bf16 %v618, %v626
        %v635 = vadd.bf16 %v619, %v627
        %v636 = vadd.bf16 %v620, %v628
        %v637 = vadd.bf16 %v621, %v629
        %v638 = vadd.bf16 %v622, %v630
        %v639 = vld [vmem:[%s5] sm:$0xf]
        %v640 = vld [vmem:[%s5 + $0x4] sm:$0xf]
        %v641 = vld [vmem:[%s5 + $0x8] sm:$0xf]
        %v642 = vld [vmem:[%s5 + $0xc] sm:$0xf]
        %v651 = vunpack.c.l.b16 %v631
        %v652 = vunpack.c.l.b16 %v632
        %v653 = vunpack.c.l.b16 %v633
        %v654 = vunpack.c.l.b16 %v634
        %v655 = vunpack.c.l.b16 %v635
        %v656 = vunpack.c.l.b16 %v636
        %v657 = vunpack.c.l.b16 %v637
        %v658 = vunpack.c.l.b16 %v638
        %v659 = vpack.c.b16 %v652, %v651
        %v660 = vpack.c.b16 %v654, %v653
        %v661 = vpack.c.b16 %v656, %v655
        %v662 = vpack.c.b16 %v658, %v657
        %v667 = vunpack.c.l.b16 %v639
        %v668 = vunpack.c.l.b16 %v640
        %v669 = vunpack.c.l.b16 %v641
        %v670 = vunpack.c.l.b16 %v642
        %v671 = vpack.c.b16 %v668, %v667
        %v672 = vpack.c.b16 %v670, %v669
        %vm675 = vcmask 261120
        %v677 = vsel %vm675, %v659, 0
        %v680 = vsel %vm675, %v660, 0
        %v683 = vsel %vm675, %v661, 0
        %v686 = vsel %vm675, %v662, 0
        %688 = vmatprep.subr.bf16.mxu0 0
        %689 = vmatpush1.bf16.msra.mxu0 %v671
        %690 = vmatprep.subr.bf16.mxu0 0
        %691 = vmatpush1.bf16.msra.mxu0 %v672
        %692 = vmatprep.subr.bf16.mxu0 0
        %693 = vmatpush1.bf16.msra.mxu0 0
        %694 = vmatprep.subr.bf16.mxu0 0
        %695 = vmatpush1.bf16.msra.mxu0 0
        %696 = vmatprep.subr.bf16.mxu0 0
        %697 = vmatpush1.bf16.msra.mxu0 0
        %698 = vmatprep.subr.bf16.mxu0 0
        %699 = vmatpush1.bf16.msra.mxu0 0
        %700 = vmatprep.subr.bf16.mxu0 0
        %701 = vmatpush1.bf16.msra.mxu0 0
        %702 = vmatprep.subr.bf16.mxu0 0
        %703 = vmatpush1.bf16.msra.mxu0 0
        %704 = vmatprep.subr.bf16.mxu0 0
        %705 = vmatpush1.bf16.msra.mxu0 0
        %706 = vmatprep.subr.bf16.mxu0 0
        %707 = vmatpush1.bf16.msra.mxu0 0
        %708 = vmatprep.subr.bf16.mxu0 0
        %709 = vmatpush1.bf16.msra.mxu0 0
        %710 = vmatprep.subr.bf16.mxu0 0
        %711 = vmatpush1.bf16.msra.mxu0 0
        %712 = vmatprep.subr.bf16.mxu0 0
        %713 = vmatpush1.bf16.msra.mxu0 0
        %714 = vmatprep.subr.bf16.mxu0 0
        %715 = vmatpush1.bf16.msra.mxu0 0
        %716 = vmatprep.subr.bf16.mxu0 0
        %717 = vmatpush1.bf16.msra.mxu0 0
        %718 = vmatprep.subr.bf16.mxu0 0
        %719 = vmatpush1.bf16.msra.mxu0 0
        %720 = vmatprep.mubr.bf16.mxu0 0
        %721 = vmatmul.mubr.bf16.gmra.mrb[0].mxu0 %v677
        %v722 = vpop.f32.mrb[0].mxu0
        %v723 = vadd.f32 0.0, %v722
        %v724 = vpop.f32.mrb[0].mxu0
        %v725 = vpop.f32.mrb[0].mxu0
        %v726 = vadd.f32 0.0, %v725
        %v727 = vpop.f32.mrb[0].mxu0
        %728 = vmatprep.mubr.bf16.mxu0 0
        %729 = vmatmul.mubr.bf16.gmra.mrb[0].mxu0 %v680
        %v730 = vpop.f32.mrb[0].mxu0
        %v731 = vadd.f32 0.0, %v730
        %v732 = vpop.f32.mrb[0].mxu0
        %v733 = vpop.f32.mrb[0].mxu0
        %v734 = vadd.f32 0.0, %v733
        %v735 = vpop.f32.mrb[0].mxu0
        %736 = vmatprep.mubr.bf16.mxu0 0
        %737 = vmatmul.mubr.bf16.gmra.mrb[0].mxu0 %v683
        %v738 = vpop.f32.mrb[0].mxu0
        %v739 = vadd.f32 0.0, %v738
        %v740 = vpop.f32.mrb[0].mxu0
        %v741 = vpop.f32.mrb[0].mxu0
        %v742 = vadd.f32 0.0, %v741
        %v743 = vpop.f32.mrb[0].mxu0
        %744 = vmatprep.mubr.bf16.mxu0 0
        %745 = vmatmul.mubr.bf16.gmra.mrb[0].mxu0 %v686
        %v746 = vpop.f32.mrb[0].mxu0
        %v747 = vadd.f32 0.0, %v746
        %v748 = vpop.f32.mrb[0].mxu0
        %v749 = vpop.f32.mrb[0].mxu0
        %v750 = vadd.f32 0.0, %v749
        %v751 = vpop.f32.mrb[0].mxu0
        %752 = vdwg.mxu0
        %v753 = vpack.c.bf16 %v726, %v723
        %v754 = vpack.c.bf16 %v734, %v731
        %v755 = vpack.c.bf16 %v742, %v739
        %v756 = vpack.c.bf16 %v750, %v747
        %v757 = vld [vmem:[%s6] sm:$0xf]
        %v758 = vld [vmem:[%s6 + $0x4] sm:$0xf]
        %v759 = vld [vmem:[%s6 + $0x8] sm:$0xf]
        %v760 = vld [vmem:[%s6 + $0xc] sm:$0xf]
        %v769 = vunpack.c.l.b16 %v615
        %v770 = vunpack.c.l.b16 %v616
        %v771 = vunpack.c.l.b16 %v617
        %v772 = vunpack.c.l.b16 %v618
        %v773 = vunpack.c.l.b16 %v619
        %v774 = vunpack.c.l.b16 %v620
        %v775 = vunpack.c.l.b16 %v621
        %v776 = vunpack.c.l.b16 %v622
        %v777 = vpack.c.b16 %v770, %v769
        %v778 = vpack.c.b16 %v772, %v771
        %v779 = vpack.c.b16 %v774, %v773
        %v780 = vpack.c.b16 %v776, %v775
        %v785 = vunpack.c.l.b16 %v757
        %v786 = vunpack.c.l.b16 %v758
        %v787 = vunpack.c.l.b16 %v759
        %v788 = vunpack.c.l.b16 %v760
        %v789 = vpack.c.b16 %v786, %v785
        %v790 = vpack.c.b16 %v788, %v787
        %v794 = vsel %vm675, %v777, 0
        %v797 = vsel %vm675, %v778, 0
        %v800 = vsel %vm675, %v779, 0
        %v803 = vsel %vm675, %v780, 0
        %805 = vmatprep.subr.bf16.mxu0 0
        %806 = vmatpush1.bf16.msra.mxu0 %v789
        %807 = vmatprep.subr.bf16.mxu0 0
        %808 = vmatpush1.bf16.msra.mxu0 %v790
        %809 = vmatprep.subr.bf16.mxu0 0
        %810 = vmatpush1.bf16.msra.mxu0 0
        %811 = vmatprep.subr.bf16.mxu0 0
        %812 = vmatpush1.bf16.msra.mxu0 0
        %813 = vmatprep.subr.bf16.mxu0 0
        %814 = vmatpush1.bf16.msra.mxu0 0
        %815 = vmatprep.subr.bf16.mxu0 0
        %816 = vmatpush1.bf16.msra.mxu0 0
        %817 = vmatprep.subr.bf16.mxu0 0
        %818 = vmatpush1.bf16.msra.mxu0 0
        %819 = vmatprep.subr.bf16.mxu0 0
        %820 = vmatpush1.bf16.msra.mxu0 0
        %821 = vmatprep.subr.bf16.mxu0 0
        %822 = vmatpush1.bf16.msra.mxu0 0
        %823 = vmatprep.subr.bf16.mxu0 0
        %824 = vmatpush1.bf16.msra.mxu0 0
        %825 = vmatprep.subr.bf16.mxu0 0
        %826 = vmatpush1.bf16.msra.mxu0 0
        %827 = vmatprep.subr.bf16.mxu0 0
        %828 = vmatpush1.bf16.msra.mxu0 0
        %829 = vmatprep.subr.bf16.mxu0 0
        %830 = vmatpush1.bf16.msra.mxu0 0
        %831 = vmatprep.subr.bf16.mxu0 0
        %832 = vmatpush1.bf16.msra.mxu0 0
        %833 = vmatprep.subr.bf16.mxu0 0
        %834 = vmatpush1.bf16.msra.mxu0 0
        %835 = vmatprep.subr.bf16.mxu0 0
        %836 = vmatpush1.bf16.msra.mxu0 0
        %837 = vmatprep.mubr.bf16.mxu0 0
        %838 = vmatmul.mubr.bf16.gmra.mrb[0].mxu0 %v794
        %v839 = vpop.f32.mrb[0].mxu0
        %v840 = vadd.f32 0.0, %v839
        %v841 = vpop.f32.mrb[0].mxu0
        %v842 = vpop.f32.mrb[0].mxu0
        %v843 = vadd.f32 0.0, %v842
        %v844 = vpop.f32.mrb[0].mxu0
        %845 = vmatprep.mubr.bf16.mxu0 0
        %846 = vmatmul.mubr.bf16.gmra.mrb[0].mxu0 %v797
        %v847 = vpop.f32.mrb[0].mxu0
        %v848 = vadd.f32 0.0, %v847
        %v849 = vpop.f32.mrb[0].mxu0
        %v850 = vpop.f32.mrb[0].mxu0
        %v851 = vadd.f32 0.0, %v850
        %v852 = vpop.f32.mrb[0].mxu0
        %853 = vmatprep.mubr.bf16.mxu0 0
        %854 = vmatmul.mubr.bf16.gmra.mrb[0].mxu0 %v800
        %v855 = vpop.f32.mrb[0].mxu0
        %v856 = vadd.f32 0.0, %v855
        %v857 = vpop.f32.mrb[0].mxu0
        %v858 = vpop.f32.mrb[0].mxu0
        %v859 = vadd.f32 0.0, %v858
        %v860 = vpop.f32.mrb[0].mxu0
        %861 = vmatprep.mubr.bf16.mxu0 0
        %862 = vmatmul.mubr.bf16.gmra.mrb[0].mxu0 %v803
        %v863 = vpop.f32.mrb[0].mxu0
        %v864 = vadd.f32 0.0, %v863
        %v865 = vpop.f32.mrb[0].mxu0
        %v866 = vpop.f32.mrb[0].mxu0
        %v867 = vadd.f32 0.0, %v866
        %v868 = vpop.f32.mrb[0].mxu0
        %869 = vdwg.mxu0
        %v870 = vpack.c.bf16 %v843, %v840
        %v871 = vpack.c.bf16 %v851, %v848
        %v872 = vpack.c.bf16 %v859, %v856
        %v873 = vpack.c.bf16 %v867, %v864
        %s874 = smul.addr %s35, 4
        %s875 = scalar_lea.vmem [#allocation2], %s874
        %v876 = vld [vmem:[%s875] sm:$0xf]
        %v878 = vsel %vm675, %v876, 0
        %v881 = vsel %vm675, %v753, 0
        %v884 = vsel %vm675, %v754, 0
        %v887 = vsel %vm675, %v755, 0
        %v890 = vsel %vm675, %v756, 0
        %892 = vmatprep.subr.bf16.mxu0 0
        %893 = vmatpush1.bf16.xpose.msra.mxu0 %v881
        %894 = vmatprep.subr.bf16.mxu0 0
        %895 = vmatpush1.bf16.xpose.msra.mxu0 %v884
        %896 = vmatprep.subr.bf16.mxu0 0
        %897 = vmatpush1.bf16.xpose.msra.mxu0 %v887
        %898 = vmatprep.subr.bf16.mxu0 0
        %899 = vmatpush1.bf16.xpose.msra.mxu0 %v890
        %900 = vmatprep.subr.bf16.mxu0 0
        %901 = vmatpush1.bf16.xpose.msra.mxu0 0
        %902 = vmatprep.subr.bf16.mxu0 0
        %903 = vmatpush1.bf16.xpose.msra.mxu0 0
        %904 = vmatprep.subr.bf16.mxu0 0
        %905 = vmatpush1.bf16.xpose.msra.mxu0 0
        %906 = vmatprep.subr.bf16.mxu0 0
        %907 = vmatpush1.bf16.xpose.msra.mxu0 0
        %908 = vmatprep.subr.bf16.mxu0 0
        %909 = vmatpush1.bf16.xpose.msra.mxu0 0
        %910 = vmatprep.subr.bf16.mxu0 0
        %911 = vmatpush1.bf16.xpose.msra.mxu0 0
        %912 = vmatprep.subr.bf16.mxu0 0
        %913 = vmatpush1.bf16.xpose.msra.mxu0 0
        %914 = vmatprep.subr.bf16.mxu0 0
        %915 = vmatpush1.bf16.xpose.msra.mxu0 0
        %916 = vmatprep.subr.bf16.mxu0 0
        %917 = vmatpush1.bf16.xpose.msra.mxu0 0
        %918 = vmatprep.subr.bf16.mxu0 0
        %919 = vmatpush1.bf16.xpose.msra.mxu0 0
        %920 = vmatprep.subr.bf16.mxu0 0
        %921 = vmatpush1.bf16.xpose.msra.mxu0 0
        %922 = vmatprep.subr.bf16.mxu0 0
        %923 = vmatpush1.bf16.xpose.msra.mxu0 0
        %924 = vmatprep.mubr.bf16.mxu0 0
        %925 = vmatmul.mubr.bf16.gmra.mrb[0].mxu0 %v878
        %v926 = vpop.f32.mrb[0].mxu0
        %v927 = vadd.f32 0.0, %v926
        %v928 = vpop.f32.mrb[0].mxu0
        %v929 = vpop.f32.mrb[0].mxu0
        %v930 = vpop.f32.mrb[0].mxu0
        %931 = vdwg.mxu0
        %s932 = smul.u32 %s35, 8
        %s933 = scalar_lea.vmem [#allocation3], %s932
        %v934 = vld [vmem:[%s933] sm:$0xff]
        %vm935 = vcmask 523264
        %v936 = vsel %vm935, %v927, -inf
        %937 = vmax.xlane.f32.xlu0 %v936
        %v938 = vpop.xlane.xlu0 %937
        %v939 = vmax.f32 %v934, %v938
        %v940 = vsub.f32 %v934, %v939
        %v941 = vmul.f32 %v940, 1.442695
        %v942 = vpow.pop %v941
        %944 = vset.pattern.permute.xlu0 0
        %945 = vperm.xlu0 %944, %v939
        %v946 = vpop.permute.xlu0 %945
        %v948 = vsub.f32 %v927, %v946
        %v949 = vmul.f32 %v948, 1.442695
        %v950 = vpow.pop %v949
        %s951 = scalar_lea.vmem [#allocation4], %s932
        %v952 = vld [vmem:[%s951] sm:$0xff]
        %v953 = vmul.f32 %v942, %v952
        %v954 = vsel %vm935, %v950, 0.0
        %955 = vadd.xlane.f32.xlu0 %v954
        %v956 = vpop.xlane.xlu0 %955
        %v957 = vadd.f32 %v953, %v956
        %vm958 = vcmask 7168
        %959 = vst.msk [vmem:[%s951] sm:$0xff] %vm958, %v957
        %s960 = scalar_lea.vmem [#allocation5], %s932
        %v961 = vld [vmem:[%s960] sm:$0xff]
        %963 = vset.pattern.permute.xlu0 0
        %964 = vperm.xlu0 %963, %v942
        %v965 = vpop.permute.xlu0 %964
        %v967 = vmul.f32 %v965, %v961
        %v968 = vpack.c.bf16 %v950, %v950
        %v970 = vsel %vm935, %v968, 0
        %972 = vmatprep.subr.bf16.mxu0 0
        %973 = vmatpush1.bf16.msra.mxu0 %v870
        %974 = vmatprep.subr.bf16.mxu0 0
        %975 = vmatpush1.bf16.msra.mxu0 %v871
        %976 = vmatprep.subr.bf16.mxu0 0
        %977 = vmatpush1.bf16.msra.mxu0 %v872
        %978 = vmatprep.subr.bf16.mxu0 0
        %979 = vmatpush1.bf16.msra.mxu0 %v873
        %980 = vmatprep.subr.bf16.mxu0 0
        %981 = vmatpush1.bf16.msra.mxu0 0
        %982 = vmatprep.subr.bf16.mxu0 0
        %983 = vmatpush1.bf16.msra.mxu0 0
        %984 = vmatprep.subr.bf16.mxu0 0
        %985 = vmatpush1.bf16.msra.mxu0 0
        %986 = vmatprep.subr.bf16.mxu0 0
        %987 = vmatpush1.bf16.msra.mxu0 0
        %988 = vmatprep.subr.bf16.mxu0 0
        %989 = vmatpush1.bf16.msra.mxu0 0
        %990 = vmatprep.subr.bf16.mxu0 0
        %991 = vmatpush1.bf16.msra.mxu0 0
        %992 = vmatprep.subr.bf16.mxu0 0
        %993 = vmatpush1.bf16.msra.mxu0 0
        %994 = vmatprep.subr.bf16.mxu0 0
        %995 = vmatpush1.bf16.msra.mxu0 0
        %996 = vmatprep.subr.bf16.mxu0 0
        %997 = vmatpush1.bf16.msra.mxu0 0
        %998 = vmatprep.subr.bf16.mxu0 0
        %999 = vmatpush1.bf16.msra.mxu0 0
        %1000 = vmatprep.subr.bf16.mxu0 0
        %1001 = vmatpush1.bf16.msra.mxu0 0
        %1002 = vmatprep.subr.bf16.mxu0 0
        %1003 = vmatpush1.bf16.msra.mxu0 0
        %1004 = vmatprep.mubr.bf16.mxu0 0
        %1005 = vmatmul.mubr.bf16.gmra.mrb[0].mxu0 %v970
        %v1006 = vpop.f32.mrb[0].mxu0
        %v1007 = vadd.f32 0.0, %v1006
        %v1008 = vpop.f32.mrb[0].mxu0
        %v1009 = vpop.f32.mrb[0].mxu0
        %v1010 = vpop.f32.mrb[0].mxu0
        %1011 = vdwg.mxu0
        %v1012 = vadd.f32 %v967, %v1007
        %1013 = vst.msk [vmem:[%s960] sm:$0xff] %vm675, %v1012
        %1014 = vst.msk [vmem:[%s933] sm:$0xff] %vm958, %v939
        // Predicated region
        $region65: #{tpu_custom_call.1} parent=59 // pred_check
          %p1015 = pneg %p520
        $region66: #{tpu_custom_call.1} parent=59 // pred_check_branch
          %1017 = sbr.rel (%p1015) target = $region68
        $region67: #{tpu_custom_call.1} parent=59 // pred_region
          %v1018 = vld [vmem:[%s960] sm:$0xff]
          %v1019 = vld [vmem:[%s951] sm:$0xff]
          %v1020 = vrcp.pop %v1019
          %1022 = vset.pattern.permute.xlu0 0
          %1023 = vperm.xlu0 %1022, %v1020
          %v1024 = vpop.permute.xlu0 %1023
          %v1026 = vmul.f32 %v1018, %v1024
          %v1027 = vld [vmem:[%s496] sm:$0xff]
          %v1028 = vpack.c.bf16 %v1026, %v1026
          %v1029 = vld [vmem:[%s7] sm:$0xf]
          %v1030 = vld [vmem:[%s7 + $0x4] sm:$0xf]
          %v1031 = vld [vmem:[%s7 + $0x8] sm:$0xf]
          %v1032 = vld [vmem:[%s7 + $0xc] sm:$0xf]
          %v1037 = vunpack.c.l.b16 %v1029
          %v1038 = vunpack.c.l.b16 %v1030
          %v1039 = vunpack.c.l.b16 %v1031
          %v1040 = vunpack.c.l.b16 %v1032
          %v1041 = vpack.c.b16 %v1038, %v1037
          %v1042 = vpack.c.b16 %v1040, %v1039
          %v1046 = vsel %vm675, %v1028, 0
          %1048 = vmatprep.subr.bf16.mxu0 0
          %1049 = vmatpush1.bf16.msra.mxu0 %v1041
          %1050 = vmatprep.subr.bf16.mxu0 0
          %1051 = vmatpush1.bf16.msra.mxu0 %v1042
          %1052 = vmatprep.subr.bf16.mxu0 0
          %1053 = vmatpush1.bf16.msra.mxu0 0
          %1054 = vmatprep.subr.bf16.mxu0 0
          %1055 = vmatpush1.bf16.msra.mxu0 0
          %1056 = vmatprep.subr.bf16.mxu0 0
          %1057 = vmatpush1.bf16.msra.mxu0 0
          %1058 = vmatprep.subr.bf16.mxu0 0
          %1059 = vmatpush1.bf16.msra.mxu0 0
          %1060 = vmatprep.subr.bf16.mxu0 0
          %1061 = vmatpush1.bf16.msra.mxu0 0
          %1062 = vmatprep.subr.bf16.mxu0 0
          %1063 = vmatpush1.bf16.msra.mxu0 0
          %1064 = vmatprep.subr.bf16.mxu0 0
          %1065 = vmatpush1.bf16.msra.mxu0 0
          %1066 = vmatprep.subr.bf16.mxu0 0
          %1067 = vmatpush1.bf16.msra.mxu0 0
          %1068 = vmatprep.subr.bf16.mxu0 0
          %1069 = vmatpush1.bf16.msra.mxu0 0
          %1070 = vmatprep.subr.bf16.mxu0 0
          %1071 = vmatpush1.bf16.msra.mxu0 0
          %1072 = vmatprep.subr.bf16.mxu0 0
          %1073 = vmatpush1.bf16.msra.mxu0 0
          %1074 = vmatprep.subr.bf16.mxu0 0
          %1075 = vmatpush1.bf16.msra.mxu0 0
          %1076 = vmatprep.subr.bf16.mxu0 0
          %1077 = vmatpush1.bf16.msra.mxu0 0
          %1078 = vmatprep.subr.bf16.mxu0 0
          %1079 = vmatpush1.bf16.msra.mxu0 0
          %1080 = vmatprep.mubr.bf16.mxu0 0
          %1081 = vmatmul.mubr.bf16.gmra.mrb[0].mxu0 %v1046
          %v1082 = vpop.f32.mrb[0].mxu0
          %v1083 = vadd.f32 0.0, %v1082
          %v1084 = vpop.f32.mrb[0].mxu0
          %v1085 = vpop.f32.mrb[0].mxu0
          %v1086 = vpop.f32.mrb[0].mxu0
          %1087 = vdwg.mxu0
          %v1088 = vadd.f32 %v1027, %v1083
          %1089 = vst.msk [vmem:[%s478] sm:$0xff] %vm675, %v1088
          %v1090 = vpack.c.bf16 %v1088, %v1088
          %v1091 = vld [vmem:[%s8] sm:$0xf]
          %v1092 = vld [vmem:[%s8 + $0x4] sm:$0xf]
          %v1093 = vld [vmem:[%s8 + $0x8] sm:$0xf]
          %v1094 = vld [vmem:[%s8 + $0xc] sm:$0xf]
          %v1099 = vunpack.c.l.b16 %v1091
          %v1100 = vunpack.c.l.b16 %v1092
          %v1101 = vunpack.c.l.b16 %v1093
          %v1102 = vunpack.c.l.b16 %v1094
          %v1103 = vpack.c.b16 %v1100, %v1099
          %v1104 = vpack.c.b16 %v1102, %v1101
          %v1108 = vsel %vm675, %v1090, 0
          %1110 = vmatprep.subr.bf16.mxu0 0
          %1111 = vmatpush1.bf16.msra.mxu0 %v1103
          %1112 = vmatprep.subr.bf16.mxu0 0
          %1113 = vmatpush1.bf16.msra.mxu0 %v1104
          %1114 = vmatprep.subr.bf16.mxu0 0
          %1115 = vmatpush1.bf16.msra.mxu0 0
          %1116 = vmatprep.subr.bf16.mxu0 0
          %1117 = vmatpush1.bf16.msra.mxu0 0
          %1118 = vmatprep.subr.bf16.mxu0 0
          %1119 = vmatpush1.bf16.msra.mxu0 0
          %1120 = vmatprep.subr.bf16.mxu0 0
          %1121 = vmatpush1.bf16.msra.mxu0 0
          %1122 = vmatprep.subr.bf16.mxu0 0
          %1123 = vmatpush1.bf16.msra.mxu0 0
          %1124 = vmatprep.subr.bf16.mxu0 0
          %1125 = vmatpush1.bf16.msra.mxu0 0
          %1126 = vmatprep.subr.bf16.mxu0 0
          %1127 = vmatpush1.bf16.msra.mxu0 0
          %1128 = vmatprep.subr.bf16.mxu0 0
          %1129 = vmatpush1.bf16.msra.mxu0 0
          %1130 = vmatprep.subr.bf16.mxu0 0
          %1131 = vmatpush1.bf16.msra.mxu0 0
          %1132 = vmatprep.subr.bf16.mxu0 0
          %1133 = vmatpush1.bf16.msra.mxu0 0
          %1134 = vmatprep.subr.bf16.mxu0 0
          %1135 = vmatpush1.bf16.msra.mxu0 0
          %1136 = vmatprep.subr.bf16.mxu0 0
          %1137 = vmatpush1.bf16.msra.mxu0 0
          %1138 = vmatprep.subr.bf16.mxu0 0
          %1139 = vmatpush1.bf16.msra.mxu0 0
          %1140 = vmatprep.subr.bf16.mxu0 0
          %1141 = vmatpush1.bf16.msra.mxu0 0
          %1142 = vmatprep.mubr.bf16.mxu0 0
          %1143 = vmatmul.mubr.bf16.gmra.mrb[0].mxu0 %v1108
          %v1144 = vpop.f32.mrb[0].mxu0
          %v1145 = vadd.f32 0.0, %v1144
          %v1146 = vpop.f32.mrb[0].mxu0
          %v1147 = vpop.f32.mrb[0].mxu0
          %v1148 = vpop.f32.mrb[0].mxu0
          %1149 = vdwg.mxu0
          %v1150 = vpack.c.bf16 %v1145, %v1145
          %vm1151 = vcmask 257024
          %1152 = vst.msk [vmem:[%s485] sm:$0xf] %vm1151, %v1150
          %v1153 = vld [vmem:[%s9] sm:$0xf]
          %v1154 = vld [vmem:[%s9 + $0x4] sm:$0xf]
          %v1155 = vld [vmem:[%s9 + $0x8] sm:$0xf]
          %v1156 = vld [vmem:[%s9 + $0xc] sm:$0xf]
          %v1161 = vunpack.c.l.b16 %v1153
          %v1162 = vunpack.c.l.b16 %v1154
          %v1163 = vunpack.c.l.b16 %v1155
          %v1164 = vunpack.c.l.b16 %v1156
          %v1165 = vpack.c.b16 %v1162, %v1161
          %v1166 = vpack.c.b16 %v1164, %v1163
          %1169 = vmatprep.subr.bf16.mxu0 0
          %1170 = vmatpush1.bf16.msra.mxu0 %v1165
          %1171 = vmatprep.subr.bf16.mxu0 0
          %1172 = vmatpush1.bf16.msra.mxu0 %v1166
          %1173 = vmatprep.subr.bf16.mxu0 0
          %1174 = vmatpush1.bf16.msra.mxu0 0
          %1175 = vmatprep.subr.bf16.mxu0 0
          %1176 = vmatpush1.bf16.msra.mxu0 0
          %1177 = vmatprep.subr.bf16.mxu0 0
          %1178 = vmatpush1.bf16.msra.mxu0 0
          %1179 = vmatprep.subr.bf16.mxu0 0
          %1180 = vmatpush1.bf16.msra.mxu0 0
          %1181 = vmatprep.subr.bf16.mxu0 0
          %1182 = vmatpush1.bf16.msra.mxu0 0
          %1183 = vmatprep.subr.bf16.mxu0 0
          %1184 = vmatpush1.bf16.msra.mxu0 0
          %1185 = vmatprep.subr.bf16.mxu0 0
          %1186 = vmatpush1.bf16.msra.mxu0 0
          %1187 = vmatprep.subr.bf16.mxu0 0
          %1188 = vmatpush1.bf16.msra.mxu0 0
          %1189 = vmatprep.subr.bf16.mxu0 0
          %1190 = vmatpush1.bf16.msra.mxu0 0
          %1191 = vmatprep.subr.bf16.mxu0 0
          %1192 = vmatpush1.bf16.msra.mxu0 0
          %1193 = vmatprep.subr.bf16.mxu0 0
          %1194 = vmatpush1.bf16.msra.mxu0 0
          %1195 = vmatprep.subr.bf16.mxu0 0
          %1196 = vmatpush1.bf16.msra.mxu0 0
          %1197 = vmatprep.subr.bf16.mxu0 0
          %1198 = vmatpush1.bf16.msra.mxu0 0
          %1199 = vmatprep.subr.bf16.mxu0 0
          %1200 = vmatpush1.bf16.msra.mxu0 0
          %1201 = vmatprep.mubr.bf16.mxu0 0
          %1202 = vmatmul.mubr.bf16.gmra.mrb[0].mxu0 %v1108
          %v1203 = vpop.f32.mrb[0].mxu0
          %v1204 = vadd.f32 0.0, %v1203
          %v1205 = vpop.f32.mrb[0].mxu0
          %v1206 = vpop.f32.mrb[0].mxu0
          %v1207 = vpop.f32.mrb[0].mxu0
          %1208 = vdwg.mxu0
          %v1209 = vpack.c.bf16 %v1204, %v1204
          %1210 = vst.msk [vmem:[%s492] sm:$0xf] %vm1151, %v1209
        $region68: #{tpu_custom_call.1} parent=59 // pred_fallthru
          _
        %s1211 = sand.u32 %s282, 1
        %s1212 = scalar_lea.sflag [#allocation7], %s1211
        %s1213 = sand.u32 %s282, 1
        %s1214 = smul.addr %s1213, 8
        %s1215 = scalar_lea.vmem [#allocation6], %s1214
        %s1216 = sand.u32 %s30, 1
        %s1217 = scalar_lea.sflag [#allocation9], %s1216
        %s1218 = sand.u32 %s308, 1
        %s1219 = smul.addr %s1218, 4
        %s1220 = scalar_lea.vmem [#allocation8], %s1219
        %s1221 = sand.u32 %s30, 1
        %s1222 = scalar_lea.sflag [#allocation9], %s1221
        %s1223 = sand.u32 %s334, 1
        %s1224 = smul.addr %s1223, 4
        %s1225 = scalar_lea.vmem [#allocation10], %s1224
        // Predicated region
        $region69: #{tpu_custom_call.1} parent=59 // pred_check
          %p1226 = pneg %p292
        $region70: #{tpu_custom_call.1} parent=59 // pred_check_branch
          %1228 = sbr.rel (%p1226) target = $region72
        $region71: #{tpu_custom_call.1} parent=59 // pred_region
          %s1230 = ssub.s32 128, 128
          %1231 = vsyncadd %s1212, %s1230
          %s1232 = smul.addr %s35, 128
          %s1233 = scalar_lea.hbm %s10, %s1232
          %s1235 = sshll.u32 %s1215, 4
          %s1236 = int_to_ptr.vmem [resolvable:$true] %s1235
          %1238 = dma.vmem_to_hbm [thread:$0]  %s1236, 128, %s1233, %s1212
        $region72: #{tpu_custom_call.1} parent=59 // pred_fallthru
          _
        // Predicated region
        $region73: #{tpu_custom_call.1} parent=59 // pred_check
          %p1239 = pneg %p318
        $region74: #{tpu_custom_call.1} parent=59 // pred_check_branch
          %1241 = sbr.rel (%p1239) target = $region76
        $region75: #{tpu_custom_call.1} parent=59 // pred_region
          %s1243 = ssub.s32 64, 64
          %1244 = vsyncadd %s1217, %s1243
          %s1245 = smul.addr %s35, 64
          %s1246 = scalar_lea.hbm %s11, %s1245
          %s1248 = sshll.u32 %s1220, 4
          %s1249 = int_to_ptr.vmem [resolvable:$true] %s1248
          %1251 = dma.vmem_to_hbm [thread:$0]  %s1249, 64, %s1246, %s1217
        $region76: #{tpu_custom_call.1} parent=59 // pred_fallthru
          _
        // Predicated region
        $region77: #{tpu_custom_call.1} parent=59 // pred_check
          %p1252 = pneg %p344
        $region78: #{tpu_custom_call.1} parent=59 // pred_check_branch
          %1254 = sbr.rel (%p1252) target = $region80
        $region79: #{tpu_custom_call.1} parent=59 // pred_region
          %s1256 = ssub.s32 64, 64
          %1257 = vsyncadd %s1222, %s1256
          %s1258 = smul.addr %s35, 64
          %s1259 = scalar_lea.hbm %s12, %s1258
          %s1261 = sshll.u32 %s1225, 4
          %s1262 = int_to_ptr.vmem [resolvable:$true] %s1261
          %1264 = dma.vmem_to_hbm [thread:$0]  %s1262, 64, %s1259, %s1222
        $region80: #{tpu_custom_call.1} parent=59 // pred_fallthru
          _
      $region60: #{tpu_custom_call.1} parent=5 // pred_fallthru
        _
      %p1265 = scmp.le.s32.totalorder 2, %s25
      // Predicated region
      $region81: #{tpu_custom_call.1} parent=5 // pred_check
        %p1266 = pneg %p1265
      $region82: #{tpu_custom_call.1} parent=5 // pred_check_branch
        %1268 = sbr.rel (%p1266) target = $region84
      $region83: #{tpu_custom_call.1} parent=5 // pred_region
        %s1269 = ssub.s32 %s25, 2
        // Predicated region
        $region85: #{tpu_custom_call.1} parent=83 // pred_check
          %p1270 = pneg %p298
        $region86: #{tpu_custom_call.1} parent=83 // pred_check_branch
          %1272 = sbr.rel (%p1270) target = $region88
        $region87: #{tpu_custom_call.1} parent=83 // pred_region
          %s1273 = sand.u32 %s283, 1
          %s1274 = scalar_lea.sflag [#allocation7], %s1273
          %s1275 = sand.u32 %s283, 1
          %s1276 = smul.addr %s1275, 8
          %s1277 = scalar_lea.vmem [#allocation6], %s1276
          %1278 = dma.done %s1274, 128
        $region88: #{tpu_custom_call.1} parent=83 // pred_fallthru
          _
        // Predicated region
        $region89: #{tpu_custom_call.1} parent=83 // pred_check
          %p1279 = pneg %p324
        $region90: #{tpu_custom_call.1} parent=83 // pred_check_branch
          %1281 = sbr.rel (%p1279) target = $region92
        $region91: #{tpu_custom_call.1} parent=83 // pred_region
          %s1282 = sand.u32 %s31, 1
          %s1283 = scalar_lea.sflag [#allocation9], %s1282
          %s1284 = sand.u32 %s309, 1
          %s1285 = smul.addr %s1284, 4
          %s1286 = scalar_lea.vmem [#allocation8], %s1285
          %1287 = dma.done %s1283, 64
        $region92: #{tpu_custom_call.1} parent=83 // pred_fallthru
          _
        // Predicated region
        $region93: #{tpu_custom_call.1} parent=83 // pred_check
          %p1288 = pneg %p350
        $region94: #{tpu_custom_call.1} parent=83 // pred_check_branch
          %1290 = sbr.rel (%p1288) target = $region96
        $region95: #{tpu_custom_call.1} parent=83 // pred_region
          %s1291 = sand.u32 %s31, 1
          %s1292 = scalar_lea.sflag [#allocation9], %s1291
          %s1293 = sand.u32 %s335, 1
          %s1294 = smul.addr %s1293, 4
          %s1295 = scalar_lea.vmem [#allocation10], %s1294
          %1296 = dma.done %s1292, 64
        $region96: #{tpu_custom_call.1} parent=83 // pred_fallthru
          _
      $region84: #{tpu_custom_call.1} parent=5 // pred_fallthru
        _
    $region6: #{tpu_custom_call.1} parent=1 // loop_footer
      %s29 = sadd.s32 1, %s25
    $region7: #{tpu_custom_call.1} parent=1 // loop_footer_branch
      %24 = sbr.rel target = $region3
    $region8: #{tpu_custom_call.1} parent=1 // loop_exit
      _
    %1297 = vsyncpa [#allocation7], 1
    %s1298 = scalar_lea.sflag [#allocation7], 1
    %1299 = vsyncpa %s1298, 1
    %1300 = vsyncpa [#allocation9], 1
    %s1301 = scalar_lea.sflag [#allocation9], 1
    %1302 = vsyncpa %s1301, 1

</llo_original>
